<compile_context>
chip_gen: v7x
topology: tpu7x:2x2x1
jax: 0.10.0
libtpu: 0.0.40
codegen_flags: <defaults>
</compile_context>

<pallas_src>
import jax
import jax.numpy as jnp
import numpy as np
from jax.experimental import pallas as pl
from jax.experimental.pallas import tpu as pltpu


def _round_up8(x):
    return ((x + 7) // 8) * 8


def _single_embedder_kernel(
    aa_idx_ref,  # (tM, 1)      int32 aatype index
    chi_ref,     # (tM, n_chi)  f32 chi angles
    mask_ref,    # (tM, n_chi)  f32 chi mask
    w_aa_ref,    # (c_aa,  c_out) bf16  W1 rows for the aatype one-hot
    w_sin_ref,   # (n_chi, c_out) bf16  W1 rows for sin(chi)*mask
    w_cos_ref,   # (n_chi, c_out) bf16  W1 rows for cos(chi)*mask
    w_msk_ref,   # (n_chi, c_out) bf16  W1 rows for mask
    b1_ref,      # (1, c_out) f32
    w2_ref,      # (c_out, c_out) bf16
    b2_ref,      # (1, c_out) f32
    out_ref,     # (tM, c_out)
):
    tM = chi_ref.shape[0]
    c_aa = w_aa_ref.shape[0]

    # Rebuild the aatype one-hot in-kernel (iota + compare on VPU slack) so the
    # HBM stream is a 4 B/row index instead of a 4*c_aa B/row one-hot.
    aa_idx = aa_idx_ref[...]                                        # (tM, 1) i32
    iota = jax.lax.broadcasted_iota(jnp.int32, (tM, c_aa), 1)
    one_hot = (iota == aa_idx).astype(jnp.bfloat16)                 # (tM, c_aa)

    # sin/cos on the EUP, mask-weighting on the VPU — both idle slots here.
    chi = chi_ref[...]
    m = mask_ref[...]
    sin_m = (jnp.sin(chi) * m).astype(jnp.bfloat16)
    cos_m = (jnp.cos(chi) * m).astype(jnp.bfloat16)
    m_bf = m.astype(jnp.bfloat16)

    # template_single_embedder: [one_hot | sin*m | cos*m | m] @ W1 + b1,
    # realised as four split-weight dots (identical math, no lane concat).
    h = jnp.dot(one_hot, w_aa_ref[...], preferred_element_type=jnp.float32)
    h = h + jnp.dot(sin_m, w_sin_ref[...], preferred_element_type=jnp.float32)
    h = h + jnp.dot(cos_m, w_cos_ref[...], preferred_element_type=jnp.float32)
    h = h + jnp.dot(m_bf, w_msk_ref[...], preferred_element_type=jnp.float32)
    h = h + b1_ref[...]

    # ReLU + template_projector.
    h = jnp.maximum(h, 0.0)
    out = jnp.dot(h.astype(jnp.bfloat16), w2_ref[...],
                  preferred_element_type=jnp.float32) + b2_ref[...]
    out_ref[...] = out.astype(out_ref.dtype)


def template_single_embedder_multimer(aatype, chi_angles, chi_mask, params, *,
                                      tile_rows=1024, out_dtype=jnp.float32):
    """Fused Pallas forward of TemplateSingleEmbedderMultimer (post chi-angles).

    aatype: int residue types (...,) [preferred] or a float one-hot (..., c_aa).
    chi_angles / chi_mask: (..., n_chi), leading dims typically (n_templ, n_res).
    params: w1 (c_in, c_out), b1 (c_out,), w2 (c_out, c_out), b2 (c_out,)
            with Linear weights pre-transposed to (in, out).
    out_dtype: set to jnp.bfloat16 if downstream tolerates it — halves the
            largest HBM stream (the output) on this bandwidth-bound kernel.
    """
    # TODO(synk): all_atom_multimer.compute_chi_angles (atom37 gather + dihedral
    # geometry from residue-constant tables) is computed upstream; chi_angles /
    # chi_mask are taken as inputs.  sin/cos + mask weighting ARE fused below.
    w1 = jnp.asarray(params["w1"])
    w2 = jnp.asarray(params["w2"])
    c_in, c_out = w1.shape
    n_chi = chi_angles.shape[-1]
    c_aa = c_in - 3 * n_chi
    lead = chi_angles.shape[:-1]
    M = int(np.prod(lead)) if lead else 1

    aatype = jnp.asarray(aatype)
    if jnp.issubdtype(aatype.dtype, jnp.integer):
        aa_idx = aatype.astype(jnp.int32)
    else:  # one-hot given (module-faithful signature); prefer passing indices.
        aa_idx = jnp.argmax(aatype, axis=-1).astype(jnp.int32)
    aa_idx = aa_idx.reshape(M, 1)
    chi = chi_angles.reshape(M, n_chi).astype(jnp.float32)
    msk = chi_mask.reshape(M, n_chi).astype(jnp.float32)

    # Split W1 by feature group; matmul weights in bf16, biases stay f32.
    w_aa = w1[:c_aa].astype(jnp.bfloat16)
    w_sin = w1[c_aa:c_aa + n_chi].astype(jnp.bfloat16)
    w_cos = w1[c_aa + n_chi:c_aa + 2 * n_chi].astype(jnp.bfloat16)
    w_msk = w1[c_aa + 2 * n_chi:].astype(jnp.bfloat16)
    b1 = jnp.asarray(params["b1"]).reshape(1, c_out).astype(jnp.float32)
    w2b = w2.astype(jnp.bfloat16)
    b2 = jnp.asarray(params["b2"]).reshape(1, c_out).astype(jnp.float32)

    # Row tile: large to amortize the ~0.35us/step pipeline cost, but keep >= 4
    # grid steps so the "parallel" axis still shards across both v7x TCs.
    # No padding copies: ragged last block; Pallas masks its OOB output rows
    # and nothing in-kernel reduces across rows, so garbage input rows are inert.
    tM = max(8, min(_round_up8(tile_rows), _round_up8(pl.cdiv(M, 4))))
    grid = (pl.cdiv(M, tM),)

    row = lambda i: (i, 0)
    full = lambda i: (0, 0)
    in_specs = [
        pl.BlockSpec((tM, 1), row),          # aatype index (int32)
        pl.BlockSpec((tM, n_chi), row),      # chi angles
        pl.BlockSpec((tM, n_chi), row),      # chi mask
        pl.BlockSpec((c_aa, c_out), full),   # W1[aatype rows]  (DMA'd once)
        pl.BlockSpec((n_chi, c_out), full),  # W1[sin rows]
        pl.BlockSpec((n_chi, c_out), full),  # W1[cos rows]
        pl.BlockSpec((n_chi, c_out), full),  # W1[mask rows]
        pl.BlockSpec((1, c_out), full),      # b1
        pl.BlockSpec((c_out, c_out), full),  # W2
        pl.BlockSpec((1, c_out), full),      # b2
    ]
    out_spec = pl.BlockSpec((tM, c_out), row)

    cost = pl.CostEstimate(
        flops=2 * M * c_out * (c_in + c_out),
        transcendentals=2 * M * n_chi,
        bytes_accessed=(M * (4 + 8 * n_chi)                         # idx+chi+mask
                        + 2 * (c_in + c_out) * c_out + 8 * c_out     # weights+biases
                        + M * c_out * np.dtype(out_dtype).itemsize)) # output

    act = pl.pallas_call(
        _single_embedder_kernel,
        out_shape=jax.ShapeDtypeStruct((M, c_out), out_dtype),
        grid_spec=pltpu.PrefetchScalarGridSpec(
            num_scalar_prefetch=0,
            grid=grid,
            in_specs=in_specs,
            out_specs=out_spec,
        ),
        compiler_params=pltpu.CompilerParams(
            dimension_semantics=("parallel",)),
        cost_estimate=cost,
    )(aa_idx, chi, msk, w_aa, w_sin, w_cos, w_msk, b1, w2b, b2)

    act = act.reshape(*lead, c_out)
    template_mask = chi_mask[..., 0].astype(out_dtype)
    return {"template_single_embedding": act, "template_mask": template_mask}


def _reference(aa_one_hot, chi, mask, p):
    """Pure-numpy reference mirroring the PyTorch forward (post chi angles)."""
    aa_one_hot = np.asarray(aa_one_hot)
    chi, mask = np.asarray(chi), np.asarray(mask)
    p = {k: np.asarray(v) for k, v in p.items()}
    feats = np.concatenate(
        [aa_one_hot, np.sin(chi) * mask, np.cos(chi) * mask, mask], axis=-1)
    h = feats @ p["w1"] + p["b1"]
    h = np.maximum(h, 0.0)
    out = h @ p["w2"] + p["b2"]
    return out, mask[..., 0]


if __name__ == "__main__":
    # Small, module-consistent shapes.  n_res=63 makes M=252, deliberately not
    # a multiple of the row tile, to exercise the ragged last block.
    N_TEMPL = 4
    N_RES = 63
    C_AATYPE = 22
    N_CHI = 4
    C_IN = C_AATYPE + 3 * N_CHI   # 34
    C_OUT = 32

    key = jax.random.PRNGKey(0)
    ks = jax.random.split(key, 7)

    aatype = jax.random.randint(ks[0], (N_TEMPL, N_RES), 0, C_AATYPE,
                                dtype=jnp.int32)
    chi_angles = jax.random.uniform(
        ks[1], (N_TEMPL, N_RES, N_CHI), jnp.float32, -np.pi, np.pi)
    chi_mask = (jax.random.uniform(ks[2], (N_TEMPL, N_RES, N_CHI)) > 0.3
                ).astype(jnp.float32)

    s = 0.1
    params = {
        "w1": s * jax.random.normal(ks[3], (C_IN, C_OUT), jnp.float32),
        "b1": s * jax.random.normal(ks[4], (C_OUT,), jnp.float32),
        "w2": s * jax.random.normal(ks[5], (C_OUT, C_OUT), jnp.float32),
        "b2": s * jax.random.normal(ks[6], (C_OUT,), jnp.float32),
    }

    out = template_single_embedder_multimer(aatype, chi_angles, chi_mask, params)
    out = jax.block_until_ready(out)

    aa_one_hot = jax.nn.one_hot(aatype, C_AATYPE, dtype=jnp.float32)
    ref_emb, ref_mask = _reference(aa_one_hot, chi_angles, chi_mask, params)

    np.testing.assert_allclose(
        np.asarray(out["template_single_embedding"]), ref_emb,
        rtol=2e-2, atol=2e-2)
    np.testing.assert_allclose(
        np.asarray(out["template_mask"]), ref_mask, rtol=0, atol=0)
    print("KERNEL_OK")
</pallas_src>

<mosaic_0001>
module attributes {stable_mosaic.version = 11 : i64} {
  func.func @_single_embedder_kernel(%arg0: i32, %arg1: memref<64x1xi32, #tpu.memory_space<vmem>>, %arg2: memref<64x4xf32, #tpu.memory_space<vmem>>, %arg3: memref<64x4xf32, #tpu.memory_space<vmem>>, %arg4: memref<22x32xbf16, #tpu.memory_space<vmem>>, %arg5: memref<4x32xbf16, #tpu.memory_space<vmem>>, %arg6: memref<4x32xbf16, #tpu.memory_space<vmem>>, %arg7: memref<4x32xbf16, #tpu.memory_space<vmem>>, %arg8: memref<1x32xf32, #tpu.memory_space<vmem>>, %arg9: memref<32x32xbf16, #tpu.memory_space<vmem>>, %arg10: memref<1x32xf32, #tpu.memory_space<vmem>>, %arg11: memref<64x32xf32, #tpu.memory_space<vmem>>) attributes {dimension_semantics = [#tpu.dimension_semantics<parallel>], iteration_bounds = array<i64: 4>, scalar_prefetch = 0 : i64, scratch_operands = 0 : i64, tpu.core_type = #tpu.core_type<tc>, window_params = [{transform_indices = @transform_0, window_bounds = array<i64: 64, 1>}, {transform_indices = @transform_1, window_bounds = array<i64: 64, 4>}, {transform_indices = @transform_2, window_bounds = array<i64: 64, 4>}, {pipeline_mode = #tpu.pipeline_mode<synchronous>, transform_indices = @transform_3, window_bounds = array<i64: 22, 32>}, {pipeline_mode = #tpu.pipeline_mode<synchronous>, transform_indices = @transform_4, window_bounds = array<i64: 4, 32>}, {pipeline_mode = #tpu.pipeline_mode<synchronous>, transform_indices = @transform_5, window_bounds = array<i64: 4, 32>}, {pipeline_mode = #tpu.pipeline_mode<synchronous>, transform_indices = @transform_6, window_bounds = array<i64: 4, 32>}, {pipeline_mode = #tpu.pipeline_mode<synchronous>, transform_indices = @transform_7, window_bounds = array<i64: 1, 32>}, {pipeline_mode = #tpu.pipeline_mode<synchronous>, transform_indices = @transform_8, window_bounds = array<i64: 32, 32>}, {pipeline_mode = #tpu.pipeline_mode<synchronous>, transform_indices = @transform_9, window_bounds = array<i64: 1, 32>}, {transform_indices = @transform_10, window_bounds = array<i64: 64, 32>}]} {
    %c0 = arith.constant 0 : index
    %c0_0 = arith.constant 0 : index
    %0 = vector.load %arg1[%c0, %c0_0] : memref<64x1xi32, #tpu.memory_space<vmem>>, vector<64x1xi32>
    %1 = tpu.iota {dimensions = array<i32: 1>} : vector<64x22xi32>
    %2 = vector.broadcast %0 : vector<64x1xi32> to vector<64x22xi32>
    %3 = arith.cmpi eq, %1, %2 : vector<64x22xi32>
    %4 = arith.extui %3 : vector<64x22xi1> to vector<64x22xi32>
    %5 = arith.sitofp %4 : vector<64x22xi32> to vector<64x22xf32>
    %6 = arith.truncf %5 : vector<64x22xf32> to vector<64x22xbf16>
    %c0_1 = arith.constant 0 : index
    %c0_2 = arith.constant 0 : index
    %7 = vector.load %arg2[%c0_1, %c0_2] : memref<64x4xf32, #tpu.memory_space<vmem>>, vector<64x4xf32>
    %c0_3 = arith.constant 0 : index
    %c0_4 = arith.constant 0 : index
    %8 = vector.load %arg3[%c0_3, %c0_4] : memref<64x4xf32, #tpu.memory_space<vmem>>, vector<64x4xf32>
    %9 = math.sin %7 : vector<64x4xf32>
    %10 = arith.mulf %9, %8 : vector<64x4xf32>
    %11 = arith.truncf %10 : vector<64x4xf32> to vector<64x4xbf16>
    %12 = math.cos %7 : vector<64x4xf32>
    %13 = arith.mulf %12, %8 : vector<64x4xf32>
    %14 = arith.truncf %13 : vector<64x4xf32> to vector<64x4xbf16>
    %15 = arith.truncf %8 : vector<64x4xf32> to vector<64x4xbf16>
    %c0_5 = arith.constant 0 : index
    %c0_6 = arith.constant 0 : index
    %16 = vector.load %arg4[%c0_5, %c0_6] : memref<22x32xbf16, #tpu.memory_space<vmem>>, vector<22x32xbf16>
    %cst = arith.constant dense<0.000000e+00> : vector<64x32xf32>
    %17 = tpu.matmul %6, %16, %cst {dimension_numbers = #tpu.dot_dimension_numbers<[1], [0], [0], [1], [0, 0, 1, 1], [], []>} : vector<64x22xbf16>, vector<22x32xbf16>, vector<64x32xf32> -> vector<64x32xf32>
    %c0_7 = arith.constant 0 : index
    %c0_8 = arith.constant 0 : index
    %18 = vector.load %arg5[%c0_7, %c0_8] : memref<4x32xbf16, #tpu.memory_space<vmem>>, vector<4x32xbf16>
    %cst_9 = arith.constant dense<0.000000e+00> : vector<64x32xf32>
    %19 = tpu.matmul %11, %18, %cst_9 {dimension_numbers = #tpu.dot_dimension_numbers<[1], [0], [0], [1], [0, 0, 1, 1], [], []>} : vector<64x4xbf16>, vector<4x32xbf16>, vector<64x32xf32> -> vector<64x32xf32>
    %20 = arith.addf %17, %19 : vector<64x32xf32>
    %c0_10 = arith.constant 0 : index
    %c0_11 = arith.constant 0 : index
    %21 = vector.load %arg6[%c0_10, %c0_11] : memref<4x32xbf16, #tpu.memory_space<vmem>>, vector<4x32xbf16>
    %cst_12 = arith.constant dense<0.000000e+00> : vector<64x32xf32>
    %22 = tpu.matmul %14, %21, %cst_12 {dimension_numbers = #tpu.dot_dimension_numbers<[1], [0], [0], [1], [0, 0, 1, 1], [], []>} : vector<64x4xbf16>, vector<4x32xbf16>, vector<64x32xf32> -> vector<64x32xf32>
    %23 = arith.addf %20, %22 : vector<64x32xf32>
    %c0_13 = arith.constant 0 : index
    %c0_14 = arith.constant 0 : index
    %24 = vector.load %arg7[%c0_13, %c0_14] : memref<4x32xbf16, #tpu.memory_space<vmem>>, vector<4x32xbf16>
    %cst_15 = arith.constant dense<0.000000e+00> : vector<64x32xf32>
    %25 = tpu.matmul %15, %24, %cst_15 {dimension_numbers = #tpu.dot_dimension_numbers<[1], [0], [0], [1], [0, 0, 1, 1], [], []>} : vector<64x4xbf16>, vector<4x32xbf16>, vector<64x32xf32> -> vector<64x32xf32>
    %26 = arith.addf %23, %25 : vector<64x32xf32>
    %c0_16 = arith.constant 0 : index
    %c0_17 = arith.constant 0 : index
    %27 = vector.load %arg8[%c0_16, %c0_17] : memref<1x32xf32, #tpu.memory_space<vmem>>, vector<1x32xf32>
    %28 = vector.broadcast %27 : vector<1x32xf32> to vector<64x32xf32>
    %29 = arith.addf %26, %28 : vector<64x32xf32>
    %cst_18 = arith.constant 0.000000e+00 : f32
    %30 = vector.broadcast %cst_18 : f32 to vector<64x32xf32>
    %31 = arith.maximumf %29, %30 : vector<64x32xf32>
    %32 = arith.truncf %31 : vector<64x32xf32> to vector<64x32xbf16>
    %c0_19 = arith.constant 0 : index
    %c0_20 = arith.constant 0 : index
    %33 = vector.load %arg9[%c0_19, %c0_20] : memref<32x32xbf16, #tpu.memory_space<vmem>>, vector<32x32xbf16>
    %cst_21 = arith.constant dense<0.000000e+00> : vector<64x32xf32>
    %34 = tpu.matmul %32, %33, %cst_21 {dimension_numbers = #tpu.dot_dimension_numbers<[1], [0], [0], [1], [0, 0, 1, 1], [], []>} : vector<64x32xbf16>, vector<32x32xbf16>, vector<64x32xf32> -> vector<64x32xf32>
    %c0_22 = arith.constant 0 : index
    %c0_23 = arith.constant 0 : index
    %35 = vector.load %arg10[%c0_22, %c0_23] : memref<1x32xf32, #tpu.memory_space<vmem>>, vector<1x32xf32>
    %36 = vector.broadcast %35 : vector<1x32xf32> to vector<64x32xf32>
    %37 = arith.addf %34, %36 : vector<64x32xf32>
    %c0_24 = arith.constant 0 : index
    %c0_25 = arith.constant 0 : index
    %38 = vector.load %arg11[%c0_24, %c0_25] : memref<64x32xf32, #tpu.memory_space<vmem>>, vector<64x32xf32>
    tpu.vector_store %arg11[%c0_24, %c0_25], %37 {strides = array<i32>} : memref<64x32xf32, #tpu.memory_space<vmem>>, vector<64x32xf32>,
    return
  }
  func.func @transform_0(%arg0: i32) -> (i32, i32) {
    %c0_i32 = arith.constant 0 : i32
    %c0_i32_0 = arith.constant 0 : i32
    return %arg0, %c0_i32 : i32, i32
  }
  func.func @transform_1(%arg0: i32) -> (i32, i32) {
    %c0_i32 = arith.constant 0 : i32
    %c0_i32_0 = arith.constant 0 : i32
    return %arg0, %c0_i32 : i32, i32
  }
  func.func @transform_2(%arg0: i32) -> (i32, i32) {
    %c0_i32 = arith.constant 0 : i32
    %c0_i32_0 = arith.constant 0 : i32
    return %arg0, %c0_i32 : i32, i32
  }
  func.func @transform_3(%arg0: i32) -> (i32, i32) {
    %c0_i32 = arith.constant 0 : i32
    %c0_i32_0 = arith.constant 0 : i32
    %c0_i32_1 = arith.constant 0 : i32
    return %c0_i32, %c0_i32_0 : i32, i32
  }
  func.func @transform_4(%arg0: i32) -> (i32, i32) {
    %c0_i32 = arith.constant 0 : i32
    %c0_i32_0 = arith.constant 0 : i32
    %c0_i32_1 = arith.constant 0 : i32
    return %c0_i32, %c0_i32_0 : i32, i32
  }
  func.func @transform_5(%arg0: i32) -> (i32, i32) {
    %c0_i32 = arith.constant 0 : i32
    %c0_i32_0 = arith.constant 0 : i32
    %c0_i32_1 = arith.constant 0 : i32
    return %c0_i32, %c0_i32_0 : i32, i32
  }
  func.func @transform_6(%arg0: i32) -> (i32, i32) {
    %c0_i32 = arith.constant 0 : i32
    %c0_i32_0 = arith.constant 0 : i32
    %c0_i32_1 = arith.constant 0 : i32
    return %c0_i32, %c0_i32_0 : i32, i32
  }
  func.func @transform_7(%arg0: i32) -> (i32, i32) {
    %c0_i32 = arith.constant 0 : i32
    %c0_i32_0 = arith.constant 0 : i32
    %c0_i32_1 = arith.constant 0 : i32
    return %c0_i32, %c0_i32_0 : i32, i32
  }
  func.func @transform_8(%arg0: i32) -> (i32, i32) {
    %c0_i32 = arith.constant 0 : i32
    %c0_i32_0 = arith.constant 0 : i32
    %c0_i32_1 = arith.constant 0 : i32
    return %c0_i32, %c0_i32_0 : i32, i32
  }
  func.func @transform_9(%arg0: i32) -> (i32, i32) {
    %c0_i32 = arith.constant 0 : i32
    %c0_i32_0 = arith.constant 0 : i32
    %c0_i32_1 = arith.constant 0 : i32
    return %c0_i32, %c0_i32_0 : i32, i32
  }
  func.func @transform_10(%arg0: i32) -> (i32, i32) {
    %c0_i32 = arith.constant 0 : i32
    %c0_i32_0 = arith.constant 0 : i32
    return %arg0, %c0_i32 : i32, i32
  }
}

</mosaic_0001>

<llo_original>
// kernel: tpu_custom_call.1
$region0: #{tpu_custom_call.1}
  #allocation0 [shape = 'u32[]', space=smem, size = 0x4, offset = 0x4, fixed_abs, tag = 'smem constant byte address 0x4 - core index']
  #allocation1 [shape = 'u32[144,128]{1,0:T(1,128)}', space=vmem, size = 0x12000, scoped, tag = 'internal scratch']
  %s0 = inlined_call_operand.vmem [shape: s32[252,1], index: 0, kind: input, shape index: {}]
  %s1 = inlined_call_operand.vmem [shape: f32[252,4], index: 1, kind: input, shape index: {}]
  %s2 = inlined_call_operand.vmem [shape: f32[252,4], index: 2, kind: input, shape index: {}]
  %s3 = inlined_call_operand.vmem [shape: bf16[22,32], index: 3, kind: input, shape index: {}]
  %s4 = inlined_call_operand.vmem [shape: bf16[4,32], index: 4, kind: input, shape index: {}]
  %s5 = inlined_call_operand.vmem [shape: bf16[4,32], index: 5, kind: input, shape index: {}]
  %s6 = inlined_call_operand.vmem [shape: bf16[4,32], index: 6, kind: input, shape index: {}]
  %s7 = inlined_call_operand.vmem [shape: f32[1,32], index: 7, kind: input, shape index: {}]
  %s8 = inlined_call_operand.vmem [shape: bf16[32,32], index: 8, kind: input, shape index: {}]
  %s9 = inlined_call_operand.vmem [shape: f32[1,32], index: 9, kind: input, shape index: {}]
  %s10 = inlined_call_operand.vmem [shape: f32[252,32], index: 10, kind: output, shape index: {}]
  %s11 = sld [smem:[#allocation0]]
  $region73: #{tpu_custom_call.1} parent=0
    _
  %s13 = ssub.s32 1, %s11
  %s14 = scalar_select 0, %s13, %s11
  loop: start=0, step=1, limit=6
  $region2: #{tpu_custom_call.1} parent=0 // loop_pre_header
    _
  $region3: #{tpu_custom_call.1} parent=0 // loop_header
    %s16 = sphi 0, %s20
    %p17 = scmp.ge.s32.totalorder %s16, 6
    %s26 = sphi 0, %s28
    %s29 = sphi 0, %s26
    %s30 = sphi 0, %s29
    %s46 = sphi 0, %s30
    %s52 = sphi 0, %s54
    %s55 = sphi 0, %s52
    %s56 = sphi 0, %s55
    %s72 = sphi 0, %s56
    %s78 = sphi 0, %s80
    %s81 = sphi 0, %s78
    %s82 = sphi 0, %s81
    %s98 = sphi 0, %s82
    %s102 = sphi 0, %s102
    %s104 = sphi 0, %s102
    %s105 = sphi 0, %s104
    %s119 = sphi 0, %s105
    %s123 = sphi 0, %s123
    %s125 = sphi 0, %s123
    %s126 = sphi 0, %s125
    %s140 = sphi 0, %s126
    %s144 = sphi 0, %s144
    %s146 = sphi 0, %s144
    %s147 = sphi 0, %s146
    %s161 = sphi 0, %s147
    %s165 = sphi 0, %s165
    %s167 = sphi 0, %s165
    %s168 = sphi 0, %s167
    %s182 = sphi 0, %s168
    %s186 = sphi 0, %s186
    %s188 = sphi 0, %s186
    %s189 = sphi 0, %s188
    %s203 = sphi 0, %s189
    %s207 = sphi 0, %s207
    %s209 = sphi 0, %s207
    %s210 = sphi 0, %s209
    %s224 = sphi 0, %s210
    %s228 = sphi 0, %s228
    %s230 = sphi 0, %s228
    %s231 = sphi 0, %s230
    %s245 = sphi 0, %s231
    %s251 = sphi 0, %s253
    %s254 = sphi 0, %s251
    %s255 = sphi 0, %s254
    %s271 = sphi 0, %s255
  $region4: #{tpu_custom_call.1} parent=0 // loop_header_branch
    %19 = sbr.rel (%p17) target = $region8
  $region5: #{tpu_custom_call.1} parent=0 // loop_body
    %s21 = ssub.s32 %s16, 1
    %s22 = ssub.s32 %s16, 2
    %s23 = sadd.s32 %s16, 1
    %s24 = ssub.s32 %s16, %s23
    %p25 = scmp.eq.s32.totalorder %s24, 0
    %s27 = sadd.s32 %s26, 1
    %s28 = scalar_select %p25, %s26, %s27
    %p31 = pneg %p25
    %p32 = scmp.eq.s32.totalorder %s16, 3
    %p33 = por %p31, %p32
    %p34 = scmp.ne.s32.totalorder %s26, %s29
    %p35 = scmp.eq.s32.totalorder %s16, 0
    %p36 = por %p34, %p35
    %p37 = scmp.ne.s32.totalorder %s26, %s29
    %p38 = scmp.eq.s32.totalorder %s21, 3
    %p39 = por %p37, %p38
    %p40 = scmp.ne.s32.totalorder %s29, %s30
    %p41 = scmp.eq.s32.totalorder %s21, 0
    %p42 = por %p40, %p41
    %p43 = scmp.ne.s32.totalorder %s29, %s30
    %p44 = scmp.eq.s32.totalorder %s22, 3
    %p45 = por %p43, %p44
    %p47 = scmp.ne.s32.totalorder %s30, %s46
    %p48 = scmp.eq.s32.totalorder %s22, 0
    %p49 = por %p47, %p48
    %s50 = ssub.s32 %s16, %s23
    %p51 = scmp.eq.s32.totalorder %s50, 0
    %s53 = sadd.s32 %s52, 1
    %s54 = scalar_select %p51, %s52, %s53
    %p57 = pneg %p51
    %p58 = scmp.eq.s32.totalorder %s16, 3
    %p59 = por %p57, %p58
    %p60 = scmp.ne.s32.totalorder %s52, %s55
    %p61 = scmp.eq.s32.totalorder %s16, 0
    %p62 = por %p60, %p61
    %p63 = scmp.ne.s32.totalorder %s52, %s55
    %p64 = scmp.eq.s32.totalorder %s21, 3
    %p65 = por %p63, %p64
    %p66 = scmp.ne.s32.totalorder %s55, %s56
    %p67 = scmp.eq.s32.totalorder %s21, 0
    %p68 = por %p66, %p67
    %p69 = scmp.ne.s32.totalorder %s55, %s56
    %p70 = scmp.eq.s32.totalorder %s22, 3
    %p71 = por %p69, %p70
    %p73 = scmp.ne.s32.totalorder %s56, %s72
    %p74 = scmp.eq.s32.totalorder %s22, 0
    %p75 = por %p73, %p74
    %s76 = ssub.s32 %s16, %s23
    %p77 = scmp.eq.s32.totalorder %s76, 0
    %s79 = sadd.s32 %s78, 1
    %s80 = scalar_select %p77, %s78, %s79
    %p83 = pneg %p77
    %p84 = scmp.eq.s32.totalorder %s16, 3
    %p85 = por %p83, %p84
    %p86 = scmp.ne.s32.totalorder %s78, %s81
    %p87 = scmp.eq.s32.totalorder %s16, 0
    %p88 = por %p86, %p87
    %p89 = scmp.ne.s32.totalorder %s78, %s81
    %p90 = scmp.eq.s32.totalorder %s21, 3
    %p91 = por %p89, %p90
    %p92 = scmp.ne.s32.totalorder %s81, %s82
    %p93 = scmp.eq.s32.totalorder %s21, 0
    %p94 = por %p92, %p93
    %p95 = scmp.ne.s32.totalorder %s81, %s82
    %p96 = scmp.eq.s32.totalorder %s22, 3
    %p97 = por %p95, %p96
    %p99 = scmp.ne.s32.totalorder %s82, %s98
    %p100 = scmp.eq.s32.totalorder %s22, 0
    %p101 = por %p99, %p100
    %s103 = sadd.s32 %s102, 1
    %p106 = scmp.eq.s32.totalorder %s16, 3
    %p107 = scmp.ne.s32.totalorder %s102, %s104
    %p108 = scmp.eq.s32.totalorder %s16, 0
    %p109 = por %p107, %p108
    %p110 = scmp.ne.s32.totalorder %s102, %s104
    %p111 = scmp.eq.s32.totalorder %s21, 3
    %p112 = por %p110, %p111
    %p113 = scmp.ne.s32.totalorder %s104, %s105
    %p114 = scmp.eq.s32.totalorder %s21, 0
    %p115 = por %p113, %p114
    %p116 = scmp.ne.s32.totalorder %s104, %s105
    %p117 = scmp.eq.s32.totalorder %s22, 3
    %p118 = por %p116, %p117
    %p120 = scmp.ne.s32.totalorder %s105, %s119
    %p121 = scmp.eq.s32.totalorder %s22, 0
    %p122 = por %p120, %p121
    %s124 = sadd.s32 %s123, 1
    %p127 = scmp.eq.s32.totalorder %s16, 3
    %p128 = scmp.ne.s32.totalorder %s123, %s125
    %p129 = scmp.eq.s32.totalorder %s16, 0
    %p130 = por %p128, %p129
    %p131 = scmp.ne.s32.totalorder %s123, %s125
    %p132 = scmp.eq.s32.totalorder %s21, 3
    %p133 = por %p131, %p132
    %p134 = scmp.ne.s32.totalorder %s125, %s126
    %p135 = scmp.eq.s32.totalorder %s21, 0
    %p136 = por %p134, %p135
    %p137 = scmp.ne.s32.totalorder %s125, %s126
    %p138 = scmp.eq.s32.totalorder %s22, 3
    %p139 = por %p137, %p138
    %p141 = scmp.ne.s32.totalorder %s126, %s140
    %p142 = scmp.eq.s32.totalorder %s22, 0
    %p143 = por %p141, %p142
    %s145 = sadd.s32 %s144, 1
    %p148 = scmp.eq.s32.totalorder %s16, 3
    %p149 = scmp.ne.s32.totalorder %s144, %s146
    %p150 = scmp.eq.s32.totalorder %s16, 0
    %p151 = por %p149, %p150
    %p152 = scmp.ne.s32.totalorder %s144, %s146
    %p153 = scmp.eq.s32.totalorder %s21, 3
    %p154 = por %p152, %p153
    %p155 = scmp.ne.s32.totalorder %s146, %s147
    %p156 = scmp.eq.s32.totalorder %s21, 0
    %p157 = por %p155, %p156
    %p158 = scmp.ne.s32.totalorder %s146, %s147
    %p159 = scmp.eq.s32.totalorder %s22, 3
    %p160 = por %p158, %p159
    %p162 = scmp.ne.s32.totalorder %s147, %s161
    %p163 = scmp.eq.s32.totalorder %s22, 0
    %p164 = por %p162, %p163
    %s166 = sadd.s32 %s165, 1
    %p169 = scmp.eq.s32.totalorder %s16, 3
    %p170 = scmp.ne.s32.totalorder %s165, %s167
    %p171 = scmp.eq.s32.totalorder %s16, 0
    %p172 = por %p170, %p171
    %p173 = scmp.ne.s32.totalorder %s165, %s167
    %p174 = scmp.eq.s32.totalorder %s21, 3
    %p175 = por %p173, %p174
    %p176 = scmp.ne.s32.totalorder %s167, %s168
    %p177 = scmp.eq.s32.totalorder %s21, 0
    %p178 = por %p176, %p177
    %p179 = scmp.ne.s32.totalorder %s167, %s168
    %p180 = scmp.eq.s32.totalorder %s22, 3
    %p181 = por %p179, %p180
    %p183 = scmp.ne.s32.totalorder %s168, %s182
    %p184 = scmp.eq.s32.totalorder %s22, 0
    %p185 = por %p183, %p184
    %s187 = sadd.s32 %s186, 1
    %p190 = scmp.eq.s32.totalorder %s16, 3
    %p191 = scmp.ne.s32.totalorder %s186, %s188
    %p192 = scmp.eq.s32.totalorder %s16, 0
    %p193 = por %p191, %p192
    %p194 = scmp.ne.s32.totalorder %s186, %s188
    %p195 = scmp.eq.s32.totalorder %s21, 3
    %p196 = por %p194, %p195
    %p197 = scmp.ne.s32.totalorder %s188, %s189
    %p198 = scmp.eq.s32.totalorder %s21, 0
    %p199 = por %p197, %p198
    %p200 = scmp.ne.s32.totalorder %s188, %s189
    %p201 = scmp.eq.s32.totalorder %s22, 3
    %p202 = por %p200, %p201
    %p204 = scmp.ne.s32.totalorder %s189, %s203
    %p205 = scmp.eq.s32.totalorder %s22, 0
    %p206 = por %p204, %p205
    %s208 = sadd.s32 %s207, 1
    %p211 = scmp.eq.s32.totalorder %s16, 3
    %p212 = scmp.ne.s32.totalorder %s207, %s209
    %p213 = scmp.eq.s32.totalorder %s16, 0
    %p214 = por %p212, %p213
    %p215 = scmp.ne.s32.totalorder %s207, %s209
    %p216 = scmp.eq.s32.totalorder %s21, 3
    %p217 = por %p215, %p216
    %p218 = scmp.ne.s32.totalorder %s209, %s210
    %p219 = scmp.eq.s32.totalorder %s21, 0
    %p220 = por %p218, %p219
    %p221 = scmp.ne.s32.totalorder %s209, %s210
    %p222 = scmp.eq.s32.totalorder %s22, 3
    %p223 = por %p221, %p222
    %p225 = scmp.ne.s32.totalorder %s210, %s224
    %p226 = scmp.eq.s32.totalorder %s22, 0
    %p227 = por %p225, %p226
    %s229 = sadd.s32 %s228, 1
    %p232 = scmp.eq.s32.totalorder %s16, 3
    %p233 = scmp.ne.s32.totalorder %s228, %s230
    %p234 = scmp.eq.s32.totalorder %s16, 0
    %p235 = por %p233, %p234
    %p236 = scmp.ne.s32.totalorder %s228, %s230
    %p237 = scmp.eq.s32.totalorder %s21, 3
    %p238 = por %p236, %p237
    %p239 = scmp.ne.s32.totalorder %s230, %s231
    %p240 = scmp.eq.s32.totalorder %s21, 0
    %p241 = por %p239, %p240
    %p242 = scmp.ne.s32.totalorder %s230, %s231
    %p243 = scmp.eq.s32.totalorder %s22, 3
    %p244 = por %p242, %p243
    %p246 = scmp.ne.s32.totalorder %s231, %s245
    %p247 = scmp.eq.s32.totalorder %s22, 0
    %p248 = por %p246, %p247
    %s249 = ssub.s32 %s16, %s23
    %p250 = scmp.eq.s32.totalorder %s249, 0
    %s252 = sadd.s32 %s251, 1
    %s253 = scalar_select %p250, %s251, %s252
    %p256 = pneg %p250
    %p257 = scmp.eq.s32.totalorder %s16, 3
    %p258 = por %p256, %p257
    %p259 = scmp.ne.s32.totalorder %s251, %s254
    %p260 = scmp.eq.s32.totalorder %s16, 0
    %p261 = por %p259, %p260
    %p262 = scmp.ne.s32.totalorder %s251, %s254
    %p263 = scmp.eq.s32.totalorder %s21, 3
    %p264 = por %p262, %p263
    %p265 = scmp.ne.s32.totalorder %s254, %s255
    %p266 = scmp.eq.s32.totalorder %s21, 0
    %p267 = por %p265, %p266
    %p268 = scmp.ne.s32.totalorder %s254, %s255
    %p269 = scmp.eq.s32.totalorder %s22, 3
    %p270 = por %p268, %p269
    %p272 = scmp.ne.s32.totalorder %s255, %s271
    %p273 = scmp.eq.s32.totalorder %s22, 0
    %p274 = por %p272, %p273
    %p275 = scmp.le.s32.totalorder 1, %s16
    %p276 = scmp.lt.s32.totalorder %s16, 5
    %p277 = pnand %p275, %p276
    %p278 = pneg %p277
    // Predicated region
    $region9: #{tpu_custom_call.1} parent=5 // pred_check
      _
    $region10: #{tpu_custom_call.1} parent=5 // pred_check_branch
      %280 = sbr.rel (%p277) target = $region12
    $region11: #{tpu_custom_call.1} parent=5 // pred_region
      %s281 = ssub.s32 %s16, 1
      // Predicated region
      $region13: #{tpu_custom_call.1} parent=11 // pred_check
        %p282 = pneg %p115
      $region14: #{tpu_custom_call.1} parent=11 // pred_check_branch
        %284 = sbr.rel (%p282) target = $region16
      $region15: #{tpu_custom_call.1} parent=11 // pred_region
        _
      $region16: #{tpu_custom_call.1} parent=11 // pred_fallthru
        _
      // Predicated region
      $region17: #{tpu_custom_call.1} parent=11 // pred_check
        %p285 = pneg %p136
      $region18: #{tpu_custom_call.1} parent=11 // pred_check_branch
        %287 = sbr.rel (%p285) target = $region20
      $region19: #{tpu_custom_call.1} parent=11 // pred_region
        _
      $region20: #{tpu_custom_call.1} parent=11 // pred_fallthru
        _
      // Predicated region
      $region21: #{tpu_custom_call.1} parent=11 // pred_check
        %p288 = pneg %p157
      $region22: #{tpu_custom_call.1} parent=11 // pred_check_branch
        %290 = sbr.rel (%p288) target = $region24
      $region23: #{tpu_custom_call.1} parent=11 // pred_region
        _
      $region24: #{tpu_custom_call.1} parent=11 // pred_fallthru
        _
      // Predicated region
      $region25: #{tpu_custom_call.1} parent=11 // pred_check
        %p291 = pneg %p178
      $region26: #{tpu_custom_call.1} parent=11 // pred_check_branch
        %293 = sbr.rel (%p291) target = $region28
      $region27: #{tpu_custom_call.1} parent=11 // pred_region
        _
      $region28: #{tpu_custom_call.1} parent=11 // pred_fallthru
        _
      // Predicated region
      $region29: #{tpu_custom_call.1} parent=11 // pred_check
        %p294 = pneg %p199
      $region30: #{tpu_custom_call.1} parent=11 // pred_check_branch
        %296 = sbr.rel (%p294) target = $region32
      $region31: #{tpu_custom_call.1} parent=11 // pred_region
        _
      $region32: #{tpu_custom_call.1} parent=11 // pred_fallthru
        _
      // Predicated region
      $region33: #{tpu_custom_call.1} parent=11 // pred_check
        %p297 = pneg %p220
      $region34: #{tpu_custom_call.1} parent=11 // pred_check_branch
        %299 = sbr.rel (%p297) target = $region36
      $region35: #{tpu_custom_call.1} parent=11 // pred_region
        _
      $region36: #{tpu_custom_call.1} parent=11 // pred_fallthru
        _
      // Predicated region
      $region37: #{tpu_custom_call.1} parent=11 // pred_check
        %p300 = pneg %p241
      $region38: #{tpu_custom_call.1} parent=11 // pred_check_branch
        %302 = sbr.rel (%p300) target = $region40
      $region39: #{tpu_custom_call.1} parent=11 // pred_region
        _
      $region40: #{tpu_custom_call.1} parent=11 // pred_fallthru
        _
    $region12: #{tpu_custom_call.1} parent=5 // pred_fallthru
      _
    %p303 = scmp.lt.s32.totalorder %s16, 4
    // Predicated region
    $region41: #{tpu_custom_call.1} parent=5 // pred_check
      %p304 = pneg %p303
    $region42: #{tpu_custom_call.1} parent=5 // pred_check_branch
      %306 = sbr.rel (%p304) target = $region44
    $region43: #{tpu_custom_call.1} parent=5 // pred_region
      // Predicated region
      $region45: #{tpu_custom_call.1} parent=43 // pred_check
        %p307 = pneg %p36
      $region46: #{tpu_custom_call.1} parent=43 // pred_check_branch
        %309 = sbr.rel (%p307) target = $region48
      $region47: #{tpu_custom_call.1} parent=43 // pred_region
        %s310 = smul.u32 8, %s16
        %p311 = scmp.lt.s32.totalorder %s310, 31
        %s312 = scalar_select %p311, %s310, 31
        %s313 = smul.addr %s312, 8
        %s314 = scalar_lea.vmem %s0, %s313
        %s315 = smul.u32 8, %s16
      $region48: #{tpu_custom_call.1} parent=43 // pred_fallthru
        _
      // Predicated region
      $region49: #{tpu_custom_call.1} parent=43 // pred_check
        %p316 = pneg %p62
      $region50: #{tpu_custom_call.1} parent=43 // pred_check_branch
        %318 = sbr.rel (%p316) target = $region52
      $region51: #{tpu_custom_call.1} parent=43 // pred_region
        %s319 = smul.u32 8, %s16
        %p320 = scmp.lt.s32.totalorder %s319, 31
        %s321 = scalar_select %p320, %s319, 31
        %s322 = smul.addr %s321, 8
        %s323 = scalar_lea.vmem %s1, %s322
        %s324 = smul.u32 8, %s16
      $region52: #{tpu_custom_call.1} parent=43 // pred_fallthru
        _
      // Predicated region
      $region53: #{tpu_custom_call.1} parent=43 // pred_check
        %p325 = pneg %p88
      $region54: #{tpu_custom_call.1} parent=43 // pred_check_branch
        %327 = sbr.rel (%p325) target = $region56
      $region55: #{tpu_custom_call.1} parent=43 // pred_region
        %s328 = smul.u32 8, %s16
        %p329 = scmp.lt.s32.totalorder %s328, 31
        %s330 = scalar_select %p329, %s328, 31
        %s331 = smul.addr %s330, 8
        %s332 = scalar_lea.vmem %s2, %s331
        %s333 = smul.u32 8, %s16
      $region56: #{tpu_custom_call.1} parent=43 // pred_fallthru
        _
    $region44: #{tpu_custom_call.1} parent=5 // pred_fallthru
      _
    %p334 = scmp.le.s32.totalorder 1, %s16
    %p335 = scmp.lt.s32.totalorder %s16, 5
    %p336 = pnand %p334, %p335
    %p337 = pneg %p336
    // Predicated region
    $region57: #{tpu_custom_call.1} parent=5 // pred_check
      _
    $region58: #{tpu_custom_call.1} parent=5 // pred_check_branch
      %339 = sbr.rel (%p336) target = $region60
    $region59: #{tpu_custom_call.1} parent=5 // pred_region
      %s340 = ssub.s32 %s16, 1
      %s341 = smul.u32 8, %s21
      %p342 = scmp.lt.s32.totalorder %s341, 31
      %s343 = scalar_select %p342, %s341, 31
      %s344 = smul.addr %s343, 8
      %s345 = scalar_lea.vmem %s0, %s344
      %p346 = pneg %p42
      %p347 = pneg %p39
      %s348 = smul.u32 8, %s21
      %p349 = scmp.lt.s32.totalorder %s348, 31
      %s350 = scalar_select %p349, %s348, 31
      %s351 = smul.addr %s350, 8
      %s352 = scalar_lea.vmem %s1, %s351
      %p353 = pneg %p68
      %p354 = pneg %p65
      %s355 = smul.u32 8, %s21
      %p356 = scmp.lt.s32.totalorder %s355, 31
      %s357 = scalar_select %p356, %s355, 31
      %s358 = smul.addr %s357, 8
      %s359 = scalar_lea.vmem %s2, %s358
      %p360 = pneg %p94
      %p361 = pneg %p91
      %p362 = pneg %p115
      %p363 = pneg %p112
      %p364 = pneg %p136
      %p365 = pneg %p133
      %p366 = pneg %p157
      %p367 = pneg %p154
      %p368 = pneg %p178
      %p369 = pneg %p175
      %p370 = pneg %p199
      %p371 = pneg %p196
      %p372 = pneg %p220
      %p373 = pneg %p217
      %p374 = pneg %p241
      %p375 = pneg %p238
      %p376 = pneg %p267
      %p377 = pneg %p264
      %s378 = smul.u32 8, %s21
      %p379 = scmp.lt.s32.totalorder %s378, 31
      %s380 = scalar_select %p379, %s378, 31
      %s381 = smul.addr %s380, 8
      %s382 = scalar_lea.vmem %s10, %s381
      %s383 = smul.u32 8, %s21
      %p384 = scmp.lt.s32.totalorder %s383, 31
      %s385 = scalar_select %p384, %s383, 31
      %s386 = smul.addr %s385, 8
      %s387 = scalar_lea.vmem %s0, %s386
      %s388 = smul.u32 8, %s21
      %s389 = smul.u32 8, %s21
      %p390 = scmp.lt.s32.totalorder %s389, 31
      %s391 = scalar_select %p390, %s389, 31
      %s392 = smul.addr %s391, 8
      %s393 = scalar_lea.vmem %s1, %s392
      %s394 = smul.u32 8, %s21
      %s395 = smul.u32 8, %s21
      %p396 = scmp.lt.s32.totalorder %s395, 31
      %s397 = scalar_select %p396, %s395, 31
      %s398 = smul.addr %s397, 8
      %s399 = scalar_lea.vmem %s2, %s398
      %s400 = smul.u32 8, %s21
      %s401 = smul.u32 8, %s21
      %p402 = scmp.lt.s32.totalorder %s401, 31
      %s403 = scalar_select %p402, %s401, 31
      %s404 = smul.addr %s403, 8
      %s405 = scalar_lea.vmem %s10, %s404
      %s406 = smul.u32 8, %s21
      %v408 = vld [vmem:[%s387] sm:$0xff]
      %v409 = vld [vmem:[%s387 + $0x8] sm:$0xff]
      %v410 = vld [vmem:[%s387 + $0x10] sm:$0xff]
      %v411 = vld [vmem:[%s387 + $0x18] sm:$0xff]
      %v412 = vld [vmem:[%s387 + $0x20] sm:$0xff]
      %v413 = vld [vmem:[%s387 + $0x28] sm:$0xff]
      %v414 = vld [vmem:[%s387 + $0x30] sm:$0xff]
      %v415 = vld [vmem:[%s387 + $0x38] sm:$0xff]
      %v416 = vlaneseq
      %v417 = vand.u32 %v416, 127
      %418 = vset.pattern.permute.xlu0 0
      %419 = vperm.xlu0 %418, %v408
      %v420 = vpop.permute.xlu0 %419
      %421 = vset.pattern.permute.xlu0 0
      %422 = vperm.xlu0 %421, %v409
      %v423 = vpop.permute.xlu0 %422
      %424 = vset.pattern.permute.xlu0 0
      %425 = vperm.xlu0 %424, %v410
      %v426 = vpop.permute.xlu0 %425
      %427 = vset.pattern.permute.xlu0 0
      %428 = vperm.xlu0 %427, %v411
      %v429 = vpop.permute.xlu0 %428
      %430 = vset.pattern.permute.xlu0 0
      %431 = vperm.xlu0 %430, %v412
      %v432 = vpop.permute.xlu0 %431
      %433 = vset.pattern.permute.xlu0 0
      %434 = vperm.xlu0 %433, %v413
      %v435 = vpop.permute.xlu0 %434
      %436 = vset.pattern.permute.xlu0 0
      %437 = vperm.xlu0 %436, %v414
      %v438 = vpop.permute.xlu0 %437
      %439 = vset.pattern.permute.xlu0 0
      %440 = vperm.xlu0 %439, %v415
      %v441 = vpop.permute.xlu0 %440
      %vm442 = vcmp.eq.s32.totalorder %v417, %v420
      %vm443 = vcmp.eq.s32.totalorder %v417, %v423
      %vm444 = vcmp.eq.s32.totalorder %v417, %v426
      %vm445 = vcmp.eq.s32.totalorder %v417, %v429
      %vm446 = vcmp.eq.s32.totalorder %v417, %v432
      %vm447 = vcmp.eq.s32.totalorder %v417, %v435
      %vm448 = vcmp.eq.s32.totalorder %v417, %v438
      %vm449 = vcmp.eq.s32.totalorder %v417, %v441
      %v450 = vsel %vm442, 1, 0
      %v451 = vsel %vm443, 1, 0
      %v452 = vsel %vm444, 1, 0
      %v453 = vsel %vm445, 1, 0
      %v454 = vsel %vm446, 1, 0
      %v455 = vsel %vm447, 1, 0
      %v456 = vsel %vm448, 1, 0
      %v457 = vsel %vm449, 1, 0
      %v458 = vcvt.s32.f32 %v450
      %v459 = vcvt.s32.f32 %v451
      %v460 = vcvt.s32.f32 %v452
      %v461 = vcvt.s32.f32 %v453
      %v462 = vcvt.s32.f32 %v454
      %v463 = vcvt.s32.f32 %v455
      %v464 = vcvt.s32.f32 %v456
      %v465 = vcvt.s32.f32 %v457
      %v466 = vpack.c.bf16 %v459, %v458
      %v467 = vpack.c.bf16 %v461, %v460
      %v468 = vpack.c.bf16 %v463, %v462
      %v469 = vpack.c.bf16 %v465, %v464
      %v470 = vld [vmem:[%s393] sm:$0xff]
      %v471 = vld [vmem:[%s393 + $0x8] sm:$0xff]
      %v472 = vld [vmem:[%s393 + $0x10] sm:$0xff]
      %v473 = vld [vmem:[%s393 + $0x18] sm:$0xff]
      %v474 = vld [vmem:[%s393 + $0x20] sm:$0xff]
      %v475 = vld [vmem:[%s393 + $0x28] sm:$0xff]
      %v476 = vld [vmem:[%s393 + $0x30] sm:$0xff]
      %v477 = vld [vmem:[%s393 + $0x38] sm:$0xff]
      %v478 = vld [vmem:[%s399] sm:$0xff]
      %v479 = vld [vmem:[%s399 + $0x8] sm:$0xff]
      %v480 = vld [vmem:[%s399 + $0x10] sm:$0xff]
      %v481 = vld [vmem:[%s399 + $0x18] sm:$0xff]
      %v482 = vld [vmem:[%s399 + $0x20] sm:$0xff]
      %v483 = vld [vmem:[%s399 + $0x28] sm:$0xff]
      %v484 = vld [vmem:[%s399 + $0x30] sm:$0xff]
      %v485 = vld [vmem:[%s399 + $0x38] sm:$0xff]
      %v486 = vand.u32 2147483647, %v470
      %vm487 = vcmp.le.f32.partialorder %v486, 0.7853982
      %vm488 = vcmp.lt.s32.totalorder %v470, 0
      %v489 = vand.u32 %v470, 2139095040
      %v490 = vshrl.u32 %v489, 23
      %v491 = vsub.s32 %v490, 127
      %v492 = vand.u32 2147483647, %v470
      %v493 = vand.u32 %v492, 8388607
      %v494 = vor.u32 %v493, 8388608
      %v495 = vsub.s32 0, %v494
      %v496 = vadd.s32 %v491, 1
      %vm497 = vcmp.gt.s32.totalorder %v496, 0
      %v498 = vsel %vm497, %v496, 0
      %v499 = vshrl.u32 %v498, 5
      %v500 = vand.u32 %v498, 31
      %v501 = vsub.s32 32, %v500
      %v502 = vshrl.u32 683565275, %v501
      %v503 = vshll.u32 683565275, %v500
      %v504 = vshrl.u32 2475754826, %v501
      %v505 = vor.u32 %v503, %v504
      %v506 = vshll.u32 2475754826, %v500
      %v507 = vshrl.u32 2131351028, %v501
      %v508 = vor.u32 %v506, %v507
      %v509 = vshll.u32 2131351028, %v500
      %v510 = vshrl.u32 2102212464, %v501
      %v511 = vor.u32 %v509, %v510
      %v512 = vshll.u32 2102212464, %v500
      %v513 = vshrl.u32 920167782, %v501
      %v514 = vor.u32 %v512, %v513
      %v515 = vshll.u32 920167782, %v500
      %v516 = vshrl.u32 1326507024, %v501
      %v517 = vor.u32 %v515, %v516
      %vm518 = vcmp.lt.s32.totalorder %v499, 1
      %vm519 = vcmp.lt.s32.totalorder %v499, 2
      %vm520 = vcmp.lt.s32.totalorder %v499, 3
      %vm521 = vcmp.lt.s32.totalorder %v499, 4
      %v522 = vsel %vm518, %v502, %v505
      %v523 = vsel %vm521, %v511, 2102212464
      %v524 = vsel %vm520, %v508, %v523
      %v525 = vsel %vm519, %v522, %v524
      %v526 = vsel %vm518, %v505, %v508
      %v527 = vsel %vm521, %v514, 920167782
      %v528 = vsel %vm520, %v511, %v527
      %v529 = vsel %vm519, %v526, %v528
      %v530 = vsel %vm518, %v508, %v511
      %v531 = vsel %vm521, %v517, 1326507024
      %v532 = vsel %vm520, %v514, %v531
      %v533 = vsel %vm519, %v530, %v532
      %v534 = vshll.u32 %v494, 8
      %v535 = vmul.u32.u64.compose %v534, %v533
      %v536 = vextract.low.u32 %v535
      %v537 = vextract.high.u32 %v535
      %v538 = vmul.u32.u64.compose %v534, %v529
      %v539 = vextract.low.u32 %v538
      %v540 = vextract.high.u32 %v538
      %v541 = vmul.u32 %v534, %v525
      %v542 = vadd.s32 %v537, %v539
      %vm543 = vc.u32 %v537, %v539
      %v544 = vadd.s32 %v540, 1
      %v545 = vsel %vm543, %v544, %v540
      %v546 = vadd.s32 %v541, %v545
      %v547 = vadd.s32 %v546, 536870912
      %v548 = vshrl.u32 %v547, 30
      %v549 = vshll.u32 %v548, 30
      %v550 = vsub.s32 %v546, %v549
      %vm551 = vcmp.lt.s32.totalorder %v550, 0
      %v552 = vsub.s32 0, %v550
      %v553 = vsel %vm551, %v552, %v550
      %v554 = vclz %v553
      %v555 = vsub.s32 %v554, 2
      %vm556 = vcmp.gt.s32.totalorder 0, %v555
      %v557 = vsel %vm556, 0, %v555
      %v558 = vsub.s32 32, %v557
      %v559 = vshll.u32 %v550, %v557
      %v560 = vshrl.u32 %v542, %v558
      %v561 = vor.u32 %v559, %v560
      %v562 = vsub.s32 4294967266, %v557
      %v563 = vadd.s32 %v562, 127
      %v564 = vshll.u32 %v563, 23
      %v565 = vor.u32 4788187, %v564
      %v566 = vand.u32 2147483647, %v565
      %v568 = vcvt.s32.f32 %v561
      %v569 = vmul.f32 %v568, %v566
      %v570 = vxor.u32 %v569, 2147483648
      %v571 = vsel %vm488, %v570, %v569
      %v572 = vsub.s32 4, %v548
      %v573 = vsel %vm488, %v572, %v548
      %v574 = vsel %vm487, %v470, %v571
      %v575 = vsel %vm487, 0, %v573
      %v576 = vcosq.f32.pop %v574
      %v577 = vsinq.f32.pop %v574
      %vm578 = vweird.f32 %v470
      %v579 = vadd.s32 %v575, 3
      %v580 = vand.u32 %v579, 3
      %vm581 = vcmp.lt.s32.totalorder %v580, 2
      %vm582 = vcmp.eq.s32.totalorder %v580, 0
      %v583 = vxor.u32 %v577, 2147483648
      %v584 = vsel %vm582, %v576, %v583
      %vm585 = vcmp.eq.s32.totalorder %v580, 2
      %v586 = vxor.u32 %v576, 2147483648
      %v587 = vsel %vm585, %v586, %v577
      %v588 = vsel %vm581, %v584, %v587
      %v589 = vsel %vm578, nan, %v588
      %v590 = vand.u32 2147483647, %v471
      %vm591 = vcmp.le.f32.partialorder %v590, 0.7853982
      %vm592 = vcmp.lt.s32.totalorder %v471, 0
      %v593 = vand.u32 %v471, 2139095040
      %v594 = vshrl.u32 %v593, 23
      %v595 = vsub.s32 %v594, 127
      %v596 = vand.u32 2147483647, %v471
      %v597 = vand.u32 %v596, 8388607
      %v598 = vor.u32 %v597, 8388608
      %v599 = vsub.s32 0, %v598
      %v600 = vadd.s32 %v595, 1
      %vm601 = vcmp.gt.s32.totalorder %v600, 0
      %v602 = vsel %vm601, %v600, 0
      %v603 = vshrl.u32 %v602, 5
      %v604 = vand.u32 %v602, 31
      %v605 = vsub.s32 32, %v604
      %v606 = vshrl.u32 683565275, %v605
      %v607 = vshll.u32 683565275, %v604
      %v608 = vshrl.u32 2475754826, %v605
      %v609 = vor.u32 %v607, %v608
      %v610 = vshll.u32 2475754826, %v604
      %v611 = vshrl.u32 2131351028, %v605
      %v612 = vor.u32 %v610, %v611
      %v613 = vshll.u32 2131351028, %v604
      %v614 = vshrl.u32 2102212464, %v605
      %v615 = vor.u32 %v613, %v614
      %v616 = vshll.u32 2102212464, %v604
      %v617 = vshrl.u32 920167782, %v605
      %v618 = vor.u32 %v616, %v617
      %v619 = vshll.u32 920167782, %v604
      %v620 = vshrl.u32 1326507024, %v605
      %v621 = vor.u32 %v619, %v620
      %vm622 = vcmp.lt.s32.totalorder %v603, 1
      %vm623 = vcmp.lt.s32.totalorder %v603, 2
      %vm624 = vcmp.lt.s32.totalorder %v603, 3
      %vm625 = vcmp.lt.s32.totalorder %v603, 4
      %v626 = vsel %vm622, %v606, %v609
      %v627 = vsel %vm625, %v615, 2102212464
      %v628 = vsel %vm624, %v612, %v627
      %v629 = vsel %vm623, %v626, %v628
      %v630 = vsel %vm622, %v609, %v612
      %v631 = vsel %vm625, %v618, 920167782
      %v632 = vsel %vm624, %v615, %v631
      %v633 = vsel %vm623, %v630, %v632
      %v634 = vsel %vm622, %v612, %v615
      %v635 = vsel %vm625, %v621, 1326507024
      %v636 = vsel %vm624, %v618, %v635
      %v637 = vsel %vm623, %v634, %v636
      %v638 = vshll.u32 %v598, 8
      %v639 = vmul.u32.u64.compose %v638, %v637
      %v640 = vextract.low.u32 %v639
      %v641 = vextract.high.u32 %v639
      %v642 = vmul.u32.u64.compose %v638, %v633
      %v643 = vextract.low.u32 %v642
      %v644 = vextract.high.u32 %v642
      %v645 = vmul.u32 %v638, %v629
      %v646 = vadd.s32 %v641, %v643
      %vm647 = vc.u32 %v641, %v643
      %v648 = vadd.s32 %v644, 1
      %v649 = vsel %vm647, %v648, %v644
      %v650 = vadd.s32 %v645, %v649
      %v651 = vadd.s32 %v650, 536870912
      %v652 = vshrl.u32 %v651, 30
      %v653 = vshll.u32 %v652, 30
      %v654 = vsub.s32 %v650, %v653
      %vm655 = vcmp.lt.s32.totalorder %v654, 0
      %v656 = vsub.s32 0, %v654
      %v657 = vsel %vm655, %v656, %v654
      %v658 = vclz %v657
      %v659 = vsub.s32 %v658, 2
      %vm660 = vcmp.gt.s32.totalorder 0, %v659
      %v661 = vsel %vm660, 0, %v659
      %v662 = vsub.s32 32, %v661
      %v663 = vshll.u32 %v654, %v661
      %v664 = vshrl.u32 %v646, %v662
      %v665 = vor.u32 %v663, %v664
      %v666 = vsub.s32 4294967266, %v661
      %v667 = vadd.s32 %v666, 127
      %v668 = vshll.u32 %v667, 23
      %v669 = vor.u32 4788187, %v668
      %v670 = vand.u32 2147483647, %v669
      %v672 = vcvt.s32.f32 %v665
      %v673 = vmul.f32 %v672, %v670
      %v674 = vxor.u32 %v673, 2147483648
      %v675 = vsel %vm592, %v674, %v673
      %v676 = vsub.s32 4, %v652
      %v677 = vsel %vm592, %v676, %v652
      %v678 = vsel %vm591, %v471, %v675
      %v679 = vsel %vm591, 0, %v677
      %v680 = vcosq.f32.pop %v678
      %v681 = vsinq.f32.pop %v678
      %vm682 = vweird.f32 %v471
      %v683 = vadd.s32 %v679, 3
      %v684 = vand.u32 %v683, 3
      %vm685 = vcmp.lt.s32.totalorder %v684, 2
      %vm686 = vcmp.eq.s32.totalorder %v684, 0
      %v687 = vxor.u32 %v681, 2147483648
      %v688 = vsel %vm686, %v680, %v687
      %vm689 = vcmp.eq.s32.totalorder %v684, 2
      %v690 = vxor.u32 %v680, 2147483648
      %v691 = vsel %vm689, %v690, %v681
      %v692 = vsel %vm685, %v688, %v691
      %v693 = vsel %vm682, nan, %v692
      %v694 = vand.u32 2147483647, %v472
      %vm695 = vcmp.le.f32.partialorder %v694, 0.7853982
      %vm696 = vcmp.lt.s32.totalorder %v472, 0
      %v697 = vand.u32 %v472, 2139095040
      %v698 = vshrl.u32 %v697, 23
      %v699 = vsub.s32 %v698, 127
      %v700 = vand.u32 2147483647, %v472
      %v701 = vand.u32 %v700, 8388607
      %v702 = vor.u32 %v701, 8388608
      %v703 = vsub.s32 0, %v702
      %v704 = vadd.s32 %v699, 1
      %vm705 = vcmp.gt.s32.totalorder %v704, 0
      %v706 = vsel %vm705, %v704, 0
      %v707 = vshrl.u32 %v706, 5
      %v708 = vand.u32 %v706, 31
      %v709 = vsub.s32 32, %v708
      %v710 = vshrl.u32 683565275, %v709
      %v711 = vshll.u32 683565275, %v708
      %v712 = vshrl.u32 2475754826, %v709
      %v713 = vor.u32 %v711, %v712
      %v714 = vshll.u32 2475754826, %v708
      %v715 = vshrl.u32 2131351028, %v709
      %v716 = vor.u32 %v714, %v715
      %v717 = vshll.u32 2131351028, %v708
      %v718 = vshrl.u32 2102212464, %v709
      %v719 = vor.u32 %v717, %v718
      %v720 = vshll.u32 2102212464, %v708
      %v721 = vshrl.u32 920167782, %v709
      %v722 = vor.u32 %v720, %v721
      %v723 = vshll.u32 920167782, %v708
      %v724 = vshrl.u32 1326507024, %v709
      %v725 = vor.u32 %v723, %v724
      %vm726 = vcmp.lt.s32.totalorder %v707, 1
      %vm727 = vcmp.lt.s32.totalorder %v707, 2
      %vm728 = vcmp.lt.s32.totalorder %v707, 3
      %vm729 = vcmp.lt.s32.totalorder %v707, 4
      %v730 = vsel %vm726, %v710, %v713
      %v731 = vsel %vm729, %v719, 2102212464
      %v732 = vsel %vm728, %v716, %v731
      %v733 = vsel %vm727, %v730, %v732
      %v734 = vsel %vm726, %v713, %v716
      %v735 = vsel %vm729, %v722, 920167782
      %v736 = vsel %vm728, %v719, %v735
      %v737 = vsel %vm727, %v734, %v736
      %v738 = vsel %vm726, %v716, %v719
      %v739 = vsel %vm729, %v725, 1326507024
      %v740 = vsel %vm728, %v722, %v739
      %v741 = vsel %vm727, %v738, %v740
      %v742 = vshll.u32 %v702, 8
      %v743 = vmul.u32.u64.compose %v742, %v741
      %v744 = vextract.low.u32 %v743
      %v745 = vextract.high.u32 %v743
      %v746 = vmul.u32.u64.compose %v742, %v737
      %v747 = vextract.low.u32 %v746
      %v748 = vextract.high.u32 %v746
      %v749 = vmul.u32 %v742, %v733
      %v750 = vadd.s32 %v745, %v747
      %vm751 = vc.u32 %v745, %v747
      %v752 = vadd.s32 %v748, 1
      %v753 = vsel %vm751, %v752, %v748
      %v754 = vadd.s32 %v749, %v753
      %v755 = vadd.s32 %v754, 536870912
      %v756 = vshrl.u32 %v755, 30
      %v757 = vshll.u32 %v756, 30
      %v758 = vsub.s32 %v754, %v757
      %vm759 = vcmp.lt.s32.totalorder %v758, 0
      %v760 = vsub.s32 0, %v758
      %v761 = vsel %vm759, %v760, %v758
      %v762 = vclz %v761
      %v763 = vsub.s32 %v762, 2
      %vm764 = vcmp.gt.s32.totalorder 0, %v763
      %v765 = vsel %vm764, 0, %v763
      %v766 = vsub.s32 32, %v765
      %v767 = vshll.u32 %v758, %v765
      %v768 = vshrl.u32 %v750, %v766
      %v769 = vor.u32 %v767, %v768
      %v770 = vsub.s32 4294967266, %v765
      %v771 = vadd.s32 %v770, 127
      %v772 = vshll.u32 %v771, 23
      %v773 = vor.u32 4788187, %v772
      %v774 = vand.u32 2147483647, %v773
      %v776 = vcvt.s32.f32 %v769
      %v777 = vmul.f32 %v776, %v774
      %v778 = vxor.u32 %v777, 2147483648
      %v779 = vsel %vm696, %v778, %v777
      %v780 = vsub.s32 4, %v756
      %v781 = vsel %vm696, %v780, %v756
      %v782 = vsel %vm695, %v472, %v779
      %v783 = vsel %vm695, 0, %v781
      %v784 = vcosq.f32.pop %v782
      %v785 = vsinq.f32.pop %v782
      %vm786 = vweird.f32 %v472
      %v787 = vadd.s32 %v783, 3
      %v788 = vand.u32 %v787, 3
      %vm789 = vcmp.lt.s32.totalorder %v788, 2
      %vm790 = vcmp.eq.s32.totalorder %v788, 0
      %v791 = vxor.u32 %v785, 2147483648
      %v792 = vsel %vm790, %v784, %v791
      %vm793 = vcmp.eq.s32.totalorder %v788, 2
      %v794 = vxor.u32 %v784, 2147483648
      %v795 = vsel %vm793, %v794, %v785
      %v796 = vsel %vm789, %v792, %v795
      %v797 = vsel %vm786, nan, %v796
      %v798 = vand.u32 2147483647, %v473
      %vm799 = vcmp.le.f32.partialorder %v798, 0.7853982
      %vm800 = vcmp.lt.s32.totalorder %v473, 0
      %v801 = vand.u32 %v473, 2139095040
      %v802 = vshrl.u32 %v801, 23
      %v803 = vsub.s32 %v802, 127
      %v804 = vand.u32 2147483647, %v473
      %v805 = vand.u32 %v804, 8388607
      %v806 = vor.u32 %v805, 8388608
      %v807 = vsub.s32 0, %v806
      %v808 = vadd.s32 %v803, 1
      %vm809 = vcmp.gt.s32.totalorder %v808, 0
      %v810 = vsel %vm809, %v808, 0
      %v811 = vshrl.u32 %v810, 5
      %v812 = vand.u32 %v810, 31
      %v813 = vsub.s32 32, %v812
      %v814 = vshrl.u32 683565275, %v813
      %v815 = vshll.u32 683565275, %v812
      %v816 = vshrl.u32 2475754826, %v813
      %v817 = vor.u32 %v815, %v816
      %v818 = vshll.u32 2475754826, %v812
      %v819 = vshrl.u32 2131351028, %v813
      %v820 = vor.u32 %v818, %v819
      %v821 = vshll.u32 2131351028, %v812
      %v822 = vshrl.u32 2102212464, %v813
      %v823 = vor.u32 %v821, %v822
      %v824 = vshll.u32 2102212464, %v812
      %v825 = vshrl.u32 920167782, %v813
      %v826 = vor.u32 %v824, %v825
      %v827 = vshll.u32 920167782, %v812
      %v828 = vshrl.u32 1326507024, %v813
      %v829 = vor.u32 %v827, %v828
      %vm830 = vcmp.lt.s32.totalorder %v811, 1
      %vm831 = vcmp.lt.s32.totalorder %v811, 2
      %vm832 = vcmp.lt.s32.totalorder %v811, 3
      %vm833 = vcmp.lt.s32.totalorder %v811, 4
      %v834 = vsel %vm830, %v814, %v817
      %v835 = vsel %vm833, %v823, 2102212464
      %v836 = vsel %vm832, %v820, %v835
      %v837 = vsel %vm831, %v834, %v836
      %v838 = vsel %vm830, %v817, %v820
      %v839 = vsel %vm833, %v826, 920167782
      %v840 = vsel %vm832, %v823, %v839
      %v841 = vsel %vm831, %v838, %v840
      %v842 = vsel %vm830, %v820, %v823
      %v843 = vsel %vm833, %v829, 1326507024
      %v844 = vsel %vm832, %v826, %v843
      %v845 = vsel %vm831, %v842, %v844
      %v846 = vshll.u32 %v806, 8
      %v847 = vmul.u32.u64.compose %v846, %v845
      %v848 = vextract.low.u32 %v847
      %v849 = vextract.high.u32 %v847
      %v850 = vmul.u32.u64.compose %v846, %v841
      %v851 = vextract.low.u32 %v850
      %v852 = vextract.high.u32 %v850
      %v853 = vmul.u32 %v846, %v837
      %v854 = vadd.s32 %v849, %v851
      %vm855 = vc.u32 %v849, %v851
      %v856 = vadd.s32 %v852, 1
      %v857 = vsel %vm855, %v856, %v852
      %v858 = vadd.s32 %v853, %v857
      %v859 = vadd.s32 %v858, 536870912
      %v860 = vshrl.u32 %v859, 30
      %v861 = vshll.u32 %v860, 30
      %v862 = vsub.s32 %v858, %v861
      %vm863 = vcmp.lt.s32.totalorder %v862, 0
      %v864 = vsub.s32 0, %v862
      %v865 = vsel %vm863, %v864, %v862
      %v866 = vclz %v865
      %v867 = vsub.s32 %v866, 2
      %vm868 = vcmp.gt.s32.totalorder 0, %v867
      %v869 = vsel %vm868, 0, %v867
      %v870 = vsub.s32 32, %v869
      %v871 = vshll.u32 %v862, %v869
      %v872 = vshrl.u32 %v854, %v870
      %v873 = vor.u32 %v871, %v872
      %v874 = vsub.s32 4294967266, %v869
      %v875 = vadd.s32 %v874, 127
      %v876 = vshll.u32 %v875, 23
      %v877 = vor.u32 4788187, %v876
      %v878 = vand.u32 2147483647, %v877
      %v880 = vcvt.s32.f32 %v873
      %v881 = vmul.f32 %v880, %v878
      %v882 = vxor.u32 %v881, 2147483648
      %v883 = vsel %vm800, %v882, %v881
      %v884 = vsub.s32 4, %v860
      %v885 = vsel %vm800, %v884, %v860
      %v886 = vsel %vm799, %v473, %v883
      %v887 = vsel %vm799, 0, %v885
      %v888 = vcosq.f32.pop %v886
      %v889 = vsinq.f32.pop %v886
      %vm890 = vweird.f32 %v473
      %v891 = vadd.s32 %v887, 3
      %v892 = vand.u32 %v891, 3
      %vm893 = vcmp.lt.s32.totalorder %v892, 2
      %vm894 = vcmp.eq.s32.totalorder %v892, 0
      %v895 = vxor.u32 %v889, 2147483648
      %v896 = vsel %vm894, %v888, %v895
      %vm897 = vcmp.eq.s32.totalorder %v892, 2
      %v898 = vxor.u32 %v888, 2147483648
      %v899 = vsel %vm897, %v898, %v889
      %v900 = vsel %vm893, %v896, %v899
      %v901 = vsel %vm890, nan, %v900
      %v902 = vand.u32 2147483647, %v474
      %vm903 = vcmp.le.f32.partialorder %v902, 0.7853982
      %vm904 = vcmp.lt.s32.totalorder %v474, 0
      %v905 = vand.u32 %v474, 2139095040
      %v906 = vshrl.u32 %v905, 23
      %v907 = vsub.s32 %v906, 127
      %v908 = vand.u32 2147483647, %v474
      %v909 = vand.u32 %v908, 8388607
      %v910 = vor.u32 %v909, 8388608
      %v911 = vsub.s32 0, %v910
      %v912 = vadd.s32 %v907, 1
      %vm913 = vcmp.gt.s32.totalorder %v912, 0
      %v914 = vsel %vm913, %v912, 0
      %v915 = vshrl.u32 %v914, 5
      %v916 = vand.u32 %v914, 31
      %v917 = vsub.s32 32, %v916
      %v918 = vshrl.u32 683565275, %v917
      %v919 = vshll.u32 683565275, %v916
      %v920 = vshrl.u32 2475754826, %v917
      %v921 = vor.u32 %v919, %v920
      %v922 = vshll.u32 2475754826, %v916
      %v923 = vshrl.u32 2131351028, %v917
      %v924 = vor.u32 %v922, %v923
      %v925 = vshll.u32 2131351028, %v916
      %v926 = vshrl.u32 2102212464, %v917
      %v927 = vor.u32 %v925, %v926
      %v928 = vshll.u32 2102212464, %v916
      %v929 = vshrl.u32 920167782, %v917
      %v930 = vor.u32 %v928, %v929
      %v931 = vshll.u32 920167782, %v916
      %v932 = vshrl.u32 1326507024, %v917
      %v933 = vor.u32 %v931, %v932
      %vm934 = vcmp.lt.s32.totalorder %v915, 1
      %vm935 = vcmp.lt.s32.totalorder %v915, 2
      %vm936 = vcmp.lt.s32.totalorder %v915, 3
      %vm937 = vcmp.lt.s32.totalorder %v915, 4
      %v938 = vsel %vm934, %v918, %v921
      %v939 = vsel %vm937, %v927, 2102212464
      %v940 = vsel %vm936, %v924, %v939
      %v941 = vsel %vm935, %v938, %v940
      %v942 = vsel %vm934, %v921, %v924
      %v943 = vsel %vm937, %v930, 920167782
      %v944 = vsel %vm936, %v927, %v943
      %v945 = vsel %vm935, %v942, %v944
      %v946 = vsel %vm934, %v924, %v927
      %v947 = vsel %vm937, %v933, 1326507024
      %v948 = vsel %vm936, %v930, %v947
      %v949 = vsel %vm935, %v946, %v948
      %v950 = vshll.u32 %v910, 8
      %v951 = vmul.u32.u64.compose %v950, %v949
      %v952 = vextract.low.u32 %v951
      %v953 = vextract.high.u32 %v951
      %v954 = vmul.u32.u64.compose %v950, %v945
      %v955 = vextract.low.u32 %v954
      %v956 = vextract.high.u32 %v954
      %v957 = vmul.u32 %v950, %v941
      %v958 = vadd.s32 %v953, %v955
      %vm959 = vc.u32 %v953, %v955
      %v960 = vadd.s32 %v956, 1
      %v961 = vsel %vm959, %v960, %v956
      %v962 = vadd.s32 %v957, %v961
      %v963 = vadd.s32 %v962, 536870912
      %v964 = vshrl.u32 %v963, 30
      %v965 = vshll.u32 %v964, 30
      %v966 = vsub.s32 %v962, %v965
      %vm967 = vcmp.lt.s32.totalorder %v966, 0
      %v968 = vsub.s32 0, %v966
      %v969 = vsel %vm967, %v968, %v966
      %v970 = vclz %v969
      %v971 = vsub.s32 %v970, 2
      %vm972 = vcmp.gt.s32.totalorder 0, %v971
      %v973 = vsel %vm972, 0, %v971
      %v974 = vsub.s32 32, %v973
      %v975 = vshll.u32 %v966, %v973
      %v976 = vshrl.u32 %v958, %v974
      %v977 = vor.u32 %v975, %v976
      %v978 = vsub.s32 4294967266, %v973
      %v979 = vadd.s32 %v978, 127
      %v980 = vshll.u32 %v979, 23
      %v981 = vor.u32 4788187, %v980
      %v982 = vand.u32 2147483647, %v981
      %v984 = vcvt.s32.f32 %v977
      %v985 = vmul.f32 %v984, %v982
      %v986 = vxor.u32 %v985, 2147483648
      %v987 = vsel %vm904, %v986, %v985
      %v988 = vsub.s32 4, %v964
      %v989 = vsel %vm904, %v988, %v964
      %v990 = vsel %vm903, %v474, %v987
      %v991 = vsel %vm903, 0, %v989
      %v992 = vcosq.f32.pop %v990
      %v993 = vsinq.f32.pop %v990
      %vm994 = vweird.f32 %v474
      %v995 = vadd.s32 %v991, 3
      %v996 = vand.u32 %v995, 3
      %vm997 = vcmp.lt.s32.totalorder %v996, 2
      %vm998 = vcmp.eq.s32.totalorder %v996, 0
      %v999 = vxor.u32 %v993, 2147483648
      %v1000 = vsel %vm998, %v992, %v999
      %vm1001 = vcmp.eq.s32.totalorder %v996, 2
      %v1002 = vxor.u32 %v992, 2147483648
      %v1003 = vsel %vm1001, %v1002, %v993
      %v1004 = vsel %vm997, %v1000, %v1003
      %v1005 = vsel %vm994, nan, %v1004
      %v1006 = vand.u32 2147483647, %v475
      %vm1007 = vcmp.le.f32.partialorder %v1006, 0.7853982
      %vm1008 = vcmp.lt.s32.totalorder %v475, 0
      %v1009 = vand.u32 %v475, 2139095040
      %v1010 = vshrl.u32 %v1009, 23
      %v1011 = vsub.s32 %v1010, 127
      %v1012 = vand.u32 2147483647, %v475
      %v1013 = vand.u32 %v1012, 8388607
      %v1014 = vor.u32 %v1013, 8388608
      %v1015 = vsub.s32 0, %v1014
      %v1016 = vadd.s32 %v1011, 1
      %vm1017 = vcmp.gt.s32.totalorder %v1016, 0
      %v1018 = vsel %vm1017, %v1016, 0
      %v1019 = vshrl.u32 %v1018, 5
      %v1020 = vand.u32 %v1018, 31
      %v1021 = vsub.s32 32, %v1020
      %v1022 = vshrl.u32 683565275, %v1021
      %v1023 = vshll.u32 683565275, %v1020
      %v1024 = vshrl.u32 2475754826, %v1021
      %v1025 = vor.u32 %v1023, %v1024
      %v1026 = vshll.u32 2475754826, %v1020
      %v1027 = vshrl.u32 2131351028, %v1021
      %v1028 = vor.u32 %v1026, %v1027
      %v1029 = vshll.u32 2131351028, %v1020
      %v1030 = vshrl.u32 2102212464, %v1021
      %v1031 = vor.u32 %v1029, %v1030
      %v1032 = vshll.u32 2102212464, %v1020
      %v1033 = vshrl.u32 920167782, %v1021
      %v1034 = vor.u32 %v1032, %v1033
      %v1035 = vshll.u32 920167782, %v1020
      %v1036 = vshrl.u32 1326507024, %v1021
      %v1037 = vor.u32 %v1035, %v1036
      %vm1038 = vcmp.lt.s32.totalorder %v1019, 1
      %vm1039 = vcmp.lt.s32.totalorder %v1019, 2
      %vm1040 = vcmp.lt.s32.totalorder %v1019, 3
      %vm1041 = vcmp.lt.s32.totalorder %v1019, 4
      %v1042 = vsel %vm1038, %v1022, %v1025
      %v1043 = vsel %vm1041, %v1031, 2102212464
      %v1044 = vsel %vm1040, %v1028, %v1043
      %v1045 = vsel %vm1039, %v1042, %v1044
      %v1046 = vsel %vm1038, %v1025, %v1028
      %v1047 = vsel %vm1041, %v1034, 920167782
      %v1048 = vsel %vm1040, %v1031, %v1047
      %v1049 = vsel %vm1039, %v1046, %v1048
      %v1050 = vsel %vm1038, %v1028, %v1031
      %v1051 = vsel %vm1041, %v1037, 1326507024
      %v1052 = vsel %vm1040, %v1034, %v1051
      %v1053 = vsel %vm1039, %v1050, %v1052
      %v1054 = vshll.u32 %v1014, 8
      %v1055 = vmul.u32.u64.compose %v1054, %v1053
      %v1056 = vextract.low.u32 %v1055
      %v1057 = vextract.high.u32 %v1055
      %v1058 = vmul.u32.u64.compose %v1054, %v1049
      %v1059 = vextract.low.u32 %v1058
      %v1060 = vextract.high.u32 %v1058
      %v1061 = vmul.u32 %v1054, %v1045
      %v1062 = vadd.s32 %v1057, %v1059
      %vm1063 = vc.u32 %v1057, %v1059
      %v1064 = vadd.s32 %v1060, 1
      %v1065 = vsel %vm1063, %v1064, %v1060
      %v1066 = vadd.s32 %v1061, %v1065
      %v1067 = vadd.s32 %v1066, 536870912
      %v1068 = vshrl.u32 %v1067, 30
      %v1069 = vshll.u32 %v1068, 30
      %v1070 = vsub.s32 %v1066, %v1069
      %vm1071 = vcmp.lt.s32.totalorder %v1070, 0
      %v1072 = vsub.s32 0, %v1070
      %v1073 = vsel %vm1071, %v1072, %v1070
      %v1074 = vclz %v1073
      %v1075 = vsub.s32 %v1074, 2
      %vm1076 = vcmp.gt.s32.totalorder 0, %v1075
      %v1077 = vsel %vm1076, 0, %v1075
      %v1078 = vsub.s32 32, %v1077
      %v1079 = vshll.u32 %v1070, %v1077
      %v1080 = vshrl.u32 %v1062, %v1078
      %v1081 = vor.u32 %v1079, %v1080
      %v1082 = vsub.s32 4294967266, %v1077
      %v1083 = vadd.s32 %v1082, 127
      %v1084 = vshll.u32 %v1083, 23
      %v1085 = vor.u32 4788187, %v1084
      %v1086 = vand.u32 2147483647, %v1085
      %v1088 = vcvt.s32.f32 %v1081
      %v1089 = vmul.f32 %v1088, %v1086
      %v1090 = vxor.u32 %v1089, 2147483648
      %v1091 = vsel %vm1008, %v1090, %v1089
      %v1092 = vsub.s32 4, %v1068
      %v1093 = vsel %vm1008, %v1092, %v1068
      %v1094 = vsel %vm1007, %v475, %v1091
      %v1095 = vsel %vm1007, 0, %v1093
      %v1096 = vcosq.f32.pop %v1094
      %v1097 = vsinq.f32.pop %v1094
      %vm1098 = vweird.f32 %v475
      %v1099 = vadd.s32 %v1095, 3
      %v1100 = vand.u32 %v1099, 3
      %vm1101 = vcmp.lt.s32.totalorder %v1100, 2
      %vm1102 = vcmp.eq.s32.totalorder %v1100, 0
      %v1103 = vxor.u32 %v1097, 2147483648
      %v1104 = vsel %vm1102, %v1096, %v1103
      %vm1105 = vcmp.eq.s32.totalorder %v1100, 2
      %v1106 = vxor.u32 %v1096, 2147483648
      %v1107 = vsel %vm1105, %v1106, %v1097
      %v1108 = vsel %vm1101, %v1104, %v1107
      %v1109 = vsel %vm1098, nan, %v1108
      %v1110 = vand.u32 2147483647, %v476
      %vm1111 = vcmp.le.f32.partialorder %v1110, 0.7853982
      %vm1112 = vcmp.lt.s32.totalorder %v476, 0
      %v1113 = vand.u32 %v476, 2139095040
      %v1114 = vshrl.u32 %v1113, 23
      %v1115 = vsub.s32 %v1114, 127
      %v1116 = vand.u32 2147483647, %v476
      %v1117 = vand.u32 %v1116, 8388607
      %v1118 = vor.u32 %v1117, 8388608
      %v1119 = vsub.s32 0, %v1118
      %v1120 = vadd.s32 %v1115, 1
      %vm1121 = vcmp.gt.s32.totalorder %v1120, 0
      %v1122 = vsel %vm1121, %v1120, 0
      %v1123 = vshrl.u32 %v1122, 5
      %v1124 = vand.u32 %v1122, 31
      %v1125 = vsub.s32 32, %v1124
      %v1126 = vshrl.u32 683565275, %v1125
      %v1127 = vshll.u32 683565275, %v1124
      %v1128 = vshrl.u32 2475754826, %v1125
      %v1129 = vor.u32 %v1127, %v1128
      %v1130 = vshll.u32 2475754826, %v1124
      %v1131 = vshrl.u32 2131351028, %v1125
      %v1132 = vor.u32 %v1130, %v1131
      %v1133 = vshll.u32 2131351028, %v1124
      %v1134 = vshrl.u32 2102212464, %v1125
      %v1135 = vor.u32 %v1133, %v1134
      %v1136 = vshll.u32 2102212464, %v1124
      %v1137 = vshrl.u32 920167782, %v1125
      %v1138 = vor.u32 %v1136, %v1137
      %v1139 = vshll.u32 920167782, %v1124
      %v1140 = vshrl.u32 1326507024, %v1125
      %v1141 = vor.u32 %v1139, %v1140
      %vm1142 = vcmp.lt.s32.totalorder %v1123, 1
      %vm1143 = vcmp.lt.s32.totalorder %v1123, 2
      %vm1144 = vcmp.lt.s32.totalorder %v1123, 3
      %vm1145 = vcmp.lt.s32.totalorder %v1123, 4
      %v1146 = vsel %vm1142, %v1126, %v1129
      %v1147 = vsel %vm1145, %v1135, 2102212464
      %v1148 = vsel %vm1144, %v1132, %v1147
      %v1149 = vsel %vm1143, %v1146, %v1148
      %v1150 = vsel %vm1142, %v1129, %v1132
      %v1151 = vsel %vm1145, %v1138, 920167782
      %v1152 = vsel %vm1144, %v1135, %v1151
      %v1153 = vsel %vm1143, %v1150, %v1152
      %v1154 = vsel %vm1142, %v1132, %v1135
      %v1155 = vsel %vm1145, %v1141, 1326507024
      %v1156 = vsel %vm1144, %v1138, %v1155
      %v1157 = vsel %vm1143, %v1154, %v1156
      %v1158 = vshll.u32 %v1118, 8
      %v1159 = vmul.u32.u64.compose %v1158, %v1157
      %v1160 = vextract.low.u32 %v1159
      %v1161 = vextract.high.u32 %v1159
      %v1162 = vmul.u32.u64.compose %v1158, %v1153
      %v1163 = vextract.low.u32 %v1162
      %v1164 = vextract.high.u32 %v1162
      %v1165 = vmul.u32 %v1158, %v1149
      %v1166 = vadd.s32 %v1161, %v1163
      %vm1167 = vc.u32 %v1161, %v1163
      %v1168 = vadd.s32 %v1164, 1
      %v1169 = vsel %vm1167, %v1168, %v1164
      %v1170 = vadd.s32 %v1165, %v1169
      %v1171 = vadd.s32 %v1170, 536870912
      %v1172 = vshrl.u32 %v1171, 30
      %v1173 = vshll.u32 %v1172, 30
      %v1174 = vsub.s32 %v1170, %v1173
      %vm1175 = vcmp.lt.s32.totalorder %v1174, 0
      %v1176 = vsub.s32 0, %v1174
      %v1177 = vsel %vm1175, %v1176, %v1174
      %v1178 = vclz %v1177
      %v1179 = vsub.s32 %v1178, 2
      %vm1180 = vcmp.gt.s32.totalorder 0, %v1179
      %v1181 = vsel %vm1180, 0, %v1179
      %v1182 = vsub.s32 32, %v1181
      %v1183 = vshll.u32 %v1174, %v1181
      %v1184 = vshrl.u32 %v1166, %v1182
      %v1185 = vor.u32 %v1183, %v1184
      %v1186 = vsub.s32 4294967266, %v1181
      %v1187 = vadd.s32 %v1186, 127
      %v1188 = vshll.u32 %v1187, 23
      %v1189 = vor.u32 4788187, %v1188
      %v1190 = vand.u32 2147483647, %v1189
      %v1192 = vcvt.s32.f32 %v1185
      %v1193 = vmul.f32 %v1192, %v1190
      %v1194 = vxor.u32 %v1193, 2147483648
      %v1195 = vsel %vm1112, %v1194, %v1193
      %v1196 = vsub.s32 4, %v1172
      %v1197 = vsel %vm1112, %v1196, %v1172
      %v1198 = vsel %vm1111, %v476, %v1195
      %v1199 = vsel %vm1111, 0, %v1197
      %v1200 = vcosq.f32.pop %v1198
      %v1201 = vsinq.f32.pop %v1198
      %vm1202 = vweird.f32 %v476
      %v1203 = vadd.s32 %v1199, 3
      %v1204 = vand.u32 %v1203, 3
      %vm1205 = vcmp.lt.s32.totalorder %v1204, 2
      %vm1206 = vcmp.eq.s32.totalorder %v1204, 0
      %v1207 = vxor.u32 %v1201, 2147483648
      %v1208 = vsel %vm1206, %v1200, %v1207
      %vm1209 = vcmp.eq.s32.totalorder %v1204, 2
      %v1210 = vxor.u32 %v1200, 2147483648
      %v1211 = vsel %vm1209, %v1210, %v1201
      %v1212 = vsel %vm1205, %v1208, %v1211
      %v1213 = vsel %vm1202, nan, %v1212
      %v1214 = vand.u32 2147483647, %v477
      %vm1215 = vcmp.le.f32.partialorder %v1214, 0.7853982
      %vm1216 = vcmp.lt.s32.totalorder %v477, 0
      %v1217 = vand.u32 %v477, 2139095040
      %v1218 = vshrl.u32 %v1217, 23
      %v1219 = vsub.s32 %v1218, 127
      %v1220 = vand.u32 2147483647, %v477
      %v1221 = vand.u32 %v1220, 8388607
      %v1222 = vor.u32 %v1221, 8388608
      %v1223 = vsub.s32 0, %v1222
      %v1224 = vadd.s32 %v1219, 1
      %vm1225 = vcmp.gt.s32.totalorder %v1224, 0
      %v1226 = vsel %vm1225, %v1224, 0
      %v1227 = vshrl.u32 %v1226, 5
      %v1228 = vand.u32 %v1226, 31
      %v1229 = vsub.s32 32, %v1228
      %v1230 = vshrl.u32 683565275, %v1229
      %v1231 = vshll.u32 683565275, %v1228
      %v1232 = vshrl.u32 2475754826, %v1229
      %v1233 = vor.u32 %v1231, %v1232
      %v1234 = vshll.u32 2475754826, %v1228
      %v1235 = vshrl.u32 2131351028, %v1229
      %v1236 = vor.u32 %v1234, %v1235
      %v1237 = vshll.u32 2131351028, %v1228
      %v1238 = vshrl.u32 2102212464, %v1229
      %v1239 = vor.u32 %v1237, %v1238
      %v1240 = vshll.u32 2102212464, %v1228
      %v1241 = vshrl.u32 920167782, %v1229
      %v1242 = vor.u32 %v1240, %v1241
      %v1243 = vshll.u32 920167782, %v1228
      %v1244 = vshrl.u32 1326507024, %v1229
      %v1245 = vor.u32 %v1243, %v1244
      %vm1246 = vcmp.lt.s32.totalorder %v1227, 1
      %vm1247 = vcmp.lt.s32.totalorder %v1227, 2
      %vm1248 = vcmp.lt.s32.totalorder %v1227, 3
      %vm1249 = vcmp.lt.s32.totalorder %v1227, 4
      %v1250 = vsel %vm1246, %v1230, %v1233
      %v1251 = vsel %vm1249, %v1239, 2102212464
      %v1252 = vsel %vm1248, %v1236, %v1251
      %v1253 = vsel %vm1247, %v1250, %v1252
      %v1254 = vsel %vm1246, %v1233, %v1236
      %v1255 = vsel %vm1249, %v1242, 920167782
      %v1256 = vsel %vm1248, %v1239, %v1255
      %v1257 = vsel %vm1247, %v1254, %v1256
      %v1258 = vsel %vm1246, %v1236, %v1239
      %v1259 = vsel %vm1249, %v1245, 1326507024
      %v1260 = vsel %vm1248, %v1242, %v1259
      %v1261 = vsel %vm1247, %v1258, %v1260
      %v1262 = vshll.u32 %v1222, 8
      %v1263 = vmul.u32.u64.compose %v1262, %v1261
      %v1264 = vextract.low.u32 %v1263
      %v1265 = vextract.high.u32 %v1263
      %v1266 = vmul.u32.u64.compose %v1262, %v1257
      %v1267 = vextract.low.u32 %v1266
      %v1268 = vextract.high.u32 %v1266
      %v1269 = vmul.u32 %v1262, %v1253
      %v1270 = vadd.s32 %v1265, %v1267
      %vm1271 = vc.u32 %v1265, %v1267
      %v1272 = vadd.s32 %v1268, 1
      %v1273 = vsel %vm1271, %v1272, %v1268
      %v1274 = vadd.s32 %v1269, %v1273
      %v1275 = vadd.s32 %v1274, 536870912
      %v1276 = vshrl.u32 %v1275, 30
      %v1277 = vshll.u32 %v1276, 30
      %v1278 = vsub.s32 %v1274, %v1277
      %vm1279 = vcmp.lt.s32.totalorder %v1278, 0
      %v1280 = vsub.s32 0, %v1278
      %v1281 = vsel %vm1279, %v1280, %v1278
      %v1282 = vclz %v1281
      %v1283 = vsub.s32 %v1282, 2
      %vm1284 = vcmp.gt.s32.totalorder 0, %v1283
      %v1285 = vsel %vm1284, 0, %v1283
      %v1286 = vsub.s32 32, %v1285
      %v1287 = vshll.u32 %v1278, %v1285
      %v1288 = vshrl.u32 %v1270, %v1286
      %v1289 = vor.u32 %v1287, %v1288
      %v1290 = vsub.s32 4294967266, %v1285
      %v1291 = vadd.s32 %v1290, 127
      %v1292 = vshll.u32 %v1291, 23
      %v1293 = vor.u32 4788187, %v1292
      %v1294 = vand.u32 2147483647, %v1293
      %v1296 = vcvt.s32.f32 %v1289
      %v1297 = vmul.f32 %v1296, %v1294
      %v1298 = vxor.u32 %v1297, 2147483648
      %v1299 = vsel %vm1216, %v1298, %v1297
      %v1300 = vsub.s32 4, %v1276
      %v1301 = vsel %vm1216, %v1300, %v1276
      %v1302 = vsel %vm1215, %v477, %v1299
      %v1303 = vsel %vm1215, 0, %v1301
      %v1304 = vcosq.f32.pop %v1302
      %v1305 = vsinq.f32.pop %v1302
      %vm1306 = vweird.f32 %v477
      %v1307 = vadd.s32 %v1303, 3
      %v1308 = vand.u32 %v1307, 3
      %vm1309 = vcmp.lt.s32.totalorder %v1308, 2
      %vm1310 = vcmp.eq.s32.totalorder %v1308, 0
      %v1311 = vxor.u32 %v1305, 2147483648
      %v1312 = vsel %vm1310, %v1304, %v1311
      %vm1313 = vcmp.eq.s32.totalorder %v1308, 2
      %v1314 = vxor.u32 %v1304, 2147483648
      %v1315 = vsel %vm1313, %v1314, %v1305
      %v1316 = vsel %vm1309, %v1312, %v1315
      %v1317 = vsel %vm1306, nan, %v1316
      %v1318 = vmul.f32 %v589, %v478
      %v1319 = vmul.f32 %v693, %v479
      %v1320 = vmul.f32 %v797, %v480
      %v1321 = vmul.f32 %v901, %v481
      %v1322 = vmul.f32 %v1005, %v482
      %v1323 = vmul.f32 %v1109, %v483
      %v1324 = vmul.f32 %v1213, %v484
      %v1325 = vmul.f32 %v1317, %v485
      %v1326 = vpack.c.bf16 %v1319, %v1318
      %v1327 = vpack.c.bf16 %v1321, %v1320
      %v1328 = vpack.c.bf16 %v1323, %v1322
      %v1329 = vpack.c.bf16 %v1325, %v1324
      %v1330 = vand.u32 2147483647, %v470
      %vm1331 = vcmp.le.f32.partialorder %v1330, 0.7853982
      %vm1332 = vcmp.lt.s32.totalorder %v470, 0
      %v1333 = vand.u32 %v470, 2139095040
      %v1334 = vshrl.u32 %v1333, 23
      %v1335 = vsub.s32 %v1334, 127
      %v1336 = vand.u32 2147483647, %v470
      %v1337 = vand.u32 %v1336, 8388607
      %v1338 = vor.u32 %v1337, 8388608
      %v1339 = vsub.s32 0, %v1338
      %v1340 = vadd.s32 %v1335, 1
      %vm1341 = vcmp.gt.s32.totalorder %v1340, 0
      %v1342 = vsel %vm1341, %v1340, 0
      %v1343 = vshrl.u32 %v1342, 5
      %v1344 = vand.u32 %v1342, 31
      %v1345 = vsub.s32 32, %v1344
      %v1346 = vshrl.u32 683565275, %v1345
      %v1347 = vshll.u32 683565275, %v1344
      %v1348 = vshrl.u32 2475754826, %v1345
      %v1349 = vor.u32 %v1347, %v1348
      %v1350 = vshll.u32 2475754826, %v1344
      %v1351 = vshrl.u32 2131351028, %v1345
      %v1352 = vor.u32 %v1350, %v1351
      %v1353 = vshll.u32 2131351028, %v1344
      %v1354 = vshrl.u32 2102212464, %v1345
      %v1355 = vor.u32 %v1353, %v1354
      %v1356 = vshll.u32 2102212464, %v1344
      %v1357 = vshrl.u32 920167782, %v1345
      %v1358 = vor.u32 %v1356, %v1357
      %v1359 = vshll.u32 920167782, %v1344
      %v1360 = vshrl.u32 1326507024, %v1345
      %v1361 = vor.u32 %v1359, %v1360
      %vm1362 = vcmp.lt.s32.totalorder %v1343, 1
      %vm1363 = vcmp.lt.s32.totalorder %v1343, 2
      %vm1364 = vcmp.lt.s32.totalorder %v1343, 3
      %vm1365 = vcmp.lt.s32.totalorder %v1343, 4
      %v1366 = vsel %vm1362, %v1346, %v1349
      %v1367 = vsel %vm1365, %v1355, 2102212464
      %v1368 = vsel %vm1364, %v1352, %v1367
      %v1369 = vsel %vm1363, %v1366, %v1368
      %v1370 = vsel %vm1362, %v1349, %v1352
      %v1371 = vsel %vm1365, %v1358, 920167782
      %v1372 = vsel %vm1364, %v1355, %v1371
      %v1373 = vsel %vm1363, %v1370, %v1372
      %v1374 = vsel %vm1362, %v1352, %v1355
      %v1375 = vsel %vm1365, %v1361, 1326507024
      %v1376 = vsel %vm1364, %v1358, %v1375
      %v1377 = vsel %vm1363, %v1374, %v1376
      %v1378 = vshll.u32 %v1338, 8
      %v1379 = vmul.u32.u64.compose %v1378, %v1377
      %v1380 = vextract.low.u32 %v1379
      %v1381 = vextract.high.u32 %v1379
      %v1382 = vmul.u32.u64.compose %v1378, %v1373
      %v1383 = vextract.low.u32 %v1382
      %v1384 = vextract.high.u32 %v1382
      %v1385 = vmul.u32 %v1378, %v1369
      %v1386 = vadd.s32 %v1381, %v1383
      %vm1387 = vc.u32 %v1381, %v1383
      %v1388 = vadd.s32 %v1384, 1
      %v1389 = vsel %vm1387, %v1388, %v1384
      %v1390 = vadd.s32 %v1385, %v1389
      %v1391 = vadd.s32 %v1390, 536870912
      %v1392 = vshrl.u32 %v1391, 30
      %v1393 = vshll.u32 %v1392, 30
      %v1394 = vsub.s32 %v1390, %v1393
      %vm1395 = vcmp.lt.s32.totalorder %v1394, 0
      %v1396 = vsub.s32 0, %v1394
      %v1397 = vsel %vm1395, %v1396, %v1394
      %v1398 = vclz %v1397
      %v1399 = vsub.s32 %v1398, 2
      %vm1400 = vcmp.gt.s32.totalorder 0, %v1399
      %v1401 = vsel %vm1400, 0, %v1399
      %v1402 = vsub.s32 32, %v1401
      %v1403 = vshll.u32 %v1394, %v1401
      %v1404 = vshrl.u32 %v1386, %v1402
      %v1405 = vor.u32 %v1403, %v1404
      %v1406 = vsub.s32 4294967266, %v1401
      %v1407 = vadd.s32 %v1406, 127
      %v1408 = vshll.u32 %v1407, 23
      %v1409 = vor.u32 4788187, %v1408
      %v1410 = vand.u32 2147483647, %v1409
      %v1412 = vcvt.s32.f32 %v1405
      %v1413 = vmul.f32 %v1412, %v1410
      %v1414 = vxor.u32 %v1413, 2147483648
      %v1415 = vsel %vm1332, %v1414, %v1413
      %v1416 = vsub.s32 4, %v1392
      %v1417 = vsel %vm1332, %v1416, %v1392
      %v1418 = vsel %vm1331, %v470, %v1415
      %v1419 = vsel %vm1331, 0, %v1417
      %v1420 = vcosq.f32.pop %v1418
      %v1421 = vsinq.f32.pop %v1418
      %vm1422 = vweird.f32 %v470
      %v1423 = vand.u32 %v1419, 3
      %vm1424 = vcmp.lt.s32.totalorder %v1423, 2
      %vm1425 = vcmp.eq.s32.totalorder %v1423, 0
      %v1426 = vxor.u32 %v1421, 2147483648
      %v1427 = vsel %vm1425, %v1420, %v1426
      %vm1428 = vcmp.eq.s32.totalorder %v1423, 2
      %v1429 = vxor.u32 %v1420, 2147483648
      %v1430 = vsel %vm1428, %v1429, %v1421
      %v1431 = vsel %vm1424, %v1427, %v1430
      %v1432 = vsel %vm1422, nan, %v1431
      %v1433 = vand.u32 2147483647, %v471
      %vm1434 = vcmp.le.f32.partialorder %v1433, 0.7853982
      %vm1435 = vcmp.lt.s32.totalorder %v471, 0
      %v1436 = vand.u32 %v471, 2139095040
      %v1437 = vshrl.u32 %v1436, 23
      %v1438 = vsub.s32 %v1437, 127
      %v1439 = vand.u32 2147483647, %v471
      %v1440 = vand.u32 %v1439, 8388607
      %v1441 = vor.u32 %v1440, 8388608
      %v1442 = vsub.s32 0, %v1441
      %v1443 = vadd.s32 %v1438, 1
      %vm1444 = vcmp.gt.s32.totalorder %v1443, 0
      %v1445 = vsel %vm1444, %v1443, 0
      %v1446 = vshrl.u32 %v1445, 5
      %v1447 = vand.u32 %v1445, 31
      %v1448 = vsub.s32 32, %v1447
      %v1449 = vshrl.u32 683565275, %v1448
      %v1450 = vshll.u32 683565275, %v1447
      %v1451 = vshrl.u32 2475754826, %v1448
      %v1452 = vor.u32 %v1450, %v1451
      %v1453 = vshll.u32 2475754826, %v1447
      %v1454 = vshrl.u32 2131351028, %v1448
      %v1455 = vor.u32 %v1453, %v1454
      %v1456 = vshll.u32 2131351028, %v1447
      %v1457 = vshrl.u32 2102212464, %v1448
      %v1458 = vor.u32 %v1456, %v1457
      %v1459 = vshll.u32 2102212464, %v1447
      %v1460 = vshrl.u32 920167782, %v1448
      %v1461 = vor.u32 %v1459, %v1460
      %v1462 = vshll.u32 920167782, %v1447
      %v1463 = vshrl.u32 1326507024, %v1448
      %v1464 = vor.u32 %v1462, %v1463
      %vm1465 = vcmp.lt.s32.totalorder %v1446, 1
      %vm1466 = vcmp.lt.s32.totalorder %v1446, 2
      %vm1467 = vcmp.lt.s32.totalorder %v1446, 3
      %vm1468 = vcmp.lt.s32.totalorder %v1446, 4
      %v1469 = vsel %vm1465, %v1449, %v1452
      %v1470 = vsel %vm1468, %v1458, 2102212464
      %v1471 = vsel %vm1467, %v1455, %v1470
      %v1472 = vsel %vm1466, %v1469, %v1471
      %v1473 = vsel %vm1465, %v1452, %v1455
      %v1474 = vsel %vm1468, %v1461, 920167782
      %v1475 = vsel %vm1467, %v1458, %v1474
      %v1476 = vsel %vm1466, %v1473, %v1475
      %v1477 = vsel %vm1465, %v1455, %v1458
      %v1478 = vsel %vm1468, %v1464, 1326507024
      %v1479 = vsel %vm1467, %v1461, %v1478
      %v1480 = vsel %vm1466, %v1477, %v1479
      %v1481 = vshll.u32 %v1441, 8
      %v1482 = vmul.u32.u64.compose %v1481, %v1480
      %v1483 = vextract.low.u32 %v1482
      %v1484 = vextract.high.u32 %v1482
      %v1485 = vmul.u32.u64.compose %v1481, %v1476
      %v1486 = vextract.low.u32 %v1485
      %v1487 = vextract.high.u32 %v1485
      %v1488 = vmul.u32 %v1481, %v1472
      %v1489 = vadd.s32 %v1484, %v1486
      %vm1490 = vc.u32 %v1484, %v1486
      %v1491 = vadd.s32 %v1487, 1
      %v1492 = vsel %vm1490, %v1491, %v1487
      %v1493 = vadd.s32 %v1488, %v1492
      %v1494 = vadd.s32 %v1493, 536870912
      %v1495 = vshrl.u32 %v1494, 30
      %v1496 = vshll.u32 %v1495, 30
      %v1497 = vsub.s32 %v1493, %v1496
      %vm1498 = vcmp.lt.s32.totalorder %v1497, 0
      %v1499 = vsub.s32 0, %v1497
      %v1500 = vsel %vm1498, %v1499, %v1497
      %v1501 = vclz %v1500
      %v1502 = vsub.s32 %v1501, 2
      %vm1503 = vcmp.gt.s32.totalorder 0, %v1502
      %v1504 = vsel %vm1503, 0, %v1502
      %v1505 = vsub.s32 32, %v1504
      %v1506 = vshll.u32 %v1497, %v1504
      %v1507 = vshrl.u32 %v1489, %v1505
      %v1508 = vor.u32 %v1506, %v1507
      %v1509 = vsub.s32 4294967266, %v1504
      %v1510 = vadd.s32 %v1509, 127
      %v1511 = vshll.u32 %v1510, 23
      %v1512 = vor.u32 4788187, %v1511
      %v1513 = vand.u32 2147483647, %v1512
      %v1515 = vcvt.s32.f32 %v1508
      %v1516 = vmul.f32 %v1515, %v1513
      %v1517 = vxor.u32 %v1516, 2147483648
      %v1518 = vsel %vm1435, %v1517, %v1516
      %v1519 = vsub.s32 4, %v1495
      %v1520 = vsel %vm1435, %v1519, %v1495
      %v1521 = vsel %vm1434, %v471, %v1518
      %v1522 = vsel %vm1434, 0, %v1520
      %v1523 = vcosq.f32.pop %v1521
      %v1524 = vsinq.f32.pop %v1521
      %vm1525 = vweird.f32 %v471
      %v1526 = vand.u32 %v1522, 3
      %vm1527 = vcmp.lt.s32.totalorder %v1526, 2
      %vm1528 = vcmp.eq.s32.totalorder %v1526, 0
      %v1529 = vxor.u32 %v1524, 2147483648
      %v1530 = vsel %vm1528, %v1523, %v1529
      %vm1531 = vcmp.eq.s32.totalorder %v1526, 2
      %v1532 = vxor.u32 %v1523, 2147483648
      %v1533 = vsel %vm1531, %v1532, %v1524
      %v1534 = vsel %vm1527, %v1530, %v1533
      %v1535 = vsel %vm1525, nan, %v1534
      %v1536 = vand.u32 2147483647, %v472
      %vm1537 = vcmp.le.f32.partialorder %v1536, 0.7853982
      %vm1538 = vcmp.lt.s32.totalorder %v472, 0
      %v1539 = vand.u32 %v472, 2139095040
      %v1540 = vshrl.u32 %v1539, 23
      %v1541 = vsub.s32 %v1540, 127
      %v1542 = vand.u32 2147483647, %v472
      %v1543 = vand.u32 %v1542, 8388607
      %v1544 = vor.u32 %v1543, 8388608
      %v1545 = vsub.s32 0, %v1544
      %v1546 = vadd.s32 %v1541, 1
      %vm1547 = vcmp.gt.s32.totalorder %v1546, 0
      %v1548 = vsel %vm1547, %v1546, 0
      %v1549 = vshrl.u32 %v1548, 5
      %v1550 = vand.u32 %v1548, 31
      %v1551 = vsub.s32 32, %v1550
      %v1552 = vshrl.u32 683565275, %v1551
      %v1553 = vshll.u32 683565275, %v1550
      %v1554 = vshrl.u32 2475754826, %v1551
      %v1555 = vor.u32 %v1553, %v1554
      %v1556 = vshll.u32 2475754826, %v1550
      %v1557 = vshrl.u32 2131351028, %v1551
      %v1558 = vor.u32 %v1556, %v1557
      %v1559 = vshll.u32 2131351028, %v1550
      %v1560 = vshrl.u32 2102212464, %v1551
      %v1561 = vor.u32 %v1559, %v1560
      %v1562 = vshll.u32 2102212464, %v1550
      %v1563 = vshrl.u32 920167782, %v1551
      %v1564 = vor.u32 %v1562, %v1563
      %v1565 = vshll.u32 920167782, %v1550
      %v1566 = vshrl.u32 1326507024, %v1551
      %v1567 = vor.u32 %v1565, %v1566
      %vm1568 = vcmp.lt.s32.totalorder %v1549, 1
      %vm1569 = vcmp.lt.s32.totalorder %v1549, 2
      %vm1570 = vcmp.lt.s32.totalorder %v1549, 3
      %vm1571 = vcmp.lt.s32.totalorder %v1549, 4
      %v1572 = vsel %vm1568, %v1552, %v1555
      %v1573 = vsel %vm1571, %v1561, 2102212464
      %v1574 = vsel %vm1570, %v1558, %v1573
      %v1575 = vsel %vm1569, %v1572, %v1574
      %v1576 = vsel %vm1568, %v1555, %v1558
      %v1577 = vsel %vm1571, %v1564, 920167782
      %v1578 = vsel %vm1570, %v1561, %v1577
      %v1579 = vsel %vm1569, %v1576, %v1578
      %v1580 = vsel %vm1568, %v1558, %v1561
      %v1581 = vsel %vm1571, %v1567, 1326507024
      %v1582 = vsel %vm1570, %v1564, %v1581
      %v1583 = vsel %vm1569, %v1580, %v1582
      %v1584 = vshll.u32 %v1544, 8
      %v1585 = vmul.u32.u64.compose %v1584, %v1583
      %v1586 = vextract.low.u32 %v1585
      %v1587 = vextract.high.u32 %v1585
      %v1588 = vmul.u32.u64.compose %v1584, %v1579
      %v1589 = vextract.low.u32 %v1588
      %v1590 = vextract.high.u32 %v1588
      %v1591 = vmul.u32 %v1584, %v1575
      %v1592 = vadd.s32 %v1587, %v1589
      %vm1593 = vc.u32 %v1587, %v1589
      %v1594 = vadd.s32 %v1590, 1
      %v1595 = vsel %vm1593, %v1594, %v1590
      %v1596 = vadd.s32 %v1591, %v1595
      %v1597 = vadd.s32 %v1596, 536870912
      %v1598 = vshrl.u32 %v1597, 30
      %v1599 = vshll.u32 %v1598, 30
      %v1600 = vsub.s32 %v1596, %v1599
      %vm1601 = vcmp.lt.s32.totalorder %v1600, 0
      %v1602 = vsub.s32 0, %v1600
      %v1603 = vsel %vm1601, %v1602, %v1600
      %v1604 = vclz %v1603
      %v1605 = vsub.s32 %v1604, 2
      %vm1606 = vcmp.gt.s32.totalorder 0, %v1605
      %v1607 = vsel %vm1606, 0, %v1605
      %v1608 = vsub.s32 32, %v1607
      %v1609 = vshll.u32 %v1600, %v1607
      %v1610 = vshrl.u32 %v1592, %v1608
      %v1611 = vor.u32 %v1609, %v1610
      %v1612 = vsub.s32 4294967266, %v1607
      %v1613 = vadd.s32 %v1612, 127
      %v1614 = vshll.u32 %v1613, 23
      %v1615 = vor.u32 4788187, %v1614
      %v1616 = vand.u32 2147483647, %v1615
      %v1618 = vcvt.s32.f32 %v1611
      %v1619 = vmul.f32 %v1618, %v1616
      %v1620 = vxor.u32 %v1619, 2147483648
      %v1621 = vsel %vm1538, %v1620, %v1619
      %v1622 = vsub.s32 4, %v1598
      %v1623 = vsel %vm1538, %v1622, %v1598
      %v1624 = vsel %vm1537, %v472, %v1621
      %v1625 = vsel %vm1537, 0, %v1623
      %v1626 = vcosq.f32.pop %v1624
      %v1627 = vsinq.f32.pop %v1624
      %vm1628 = vweird.f32 %v472
      %v1629 = vand.u32 %v1625, 3
      %vm1630 = vcmp.lt.s32.totalorder %v1629, 2
      %vm1631 = vcmp.eq.s32.totalorder %v1629, 0
      %v1632 = vxor.u32 %v1627, 2147483648
      %v1633 = vsel %vm1631, %v1626, %v1632
      %vm1634 = vcmp.eq.s32.totalorder %v1629, 2
      %v1635 = vxor.u32 %v1626, 2147483648
      %v1636 = vsel %vm1634, %v1635, %v1627
      %v1637 = vsel %vm1630, %v1633, %v1636
      %v1638 = vsel %vm1628, nan, %v1637
      %v1639 = vand.u32 2147483647, %v473
      %vm1640 = vcmp.le.f32.partialorder %v1639, 0.7853982
      %vm1641 = vcmp.lt.s32.totalorder %v473, 0
      %v1642 = vand.u32 %v473, 2139095040
      %v1643 = vshrl.u32 %v1642, 23
      %v1644 = vsub.s32 %v1643, 127
      %v1645 = vand.u32 2147483647, %v473
      %v1646 = vand.u32 %v1645, 8388607
      %v1647 = vor.u32 %v1646, 8388608
      %v1648 = vsub.s32 0, %v1647
      %v1649 = vadd.s32 %v1644, 1
      %vm1650 = vcmp.gt.s32.totalorder %v1649, 0
      %v1651 = vsel %vm1650, %v1649, 0
      %v1652 = vshrl.u32 %v1651, 5
      %v1653 = vand.u32 %v1651, 31
      %v1654 = vsub.s32 32, %v1653
      %v1655 = vshrl.u32 683565275, %v1654
      %v1656 = vshll.u32 683565275, %v1653
      %v1657 = vshrl.u32 2475754826, %v1654
      %v1658 = vor.u32 %v1656, %v1657
      %v1659 = vshll.u32 2475754826, %v1653
      %v1660 = vshrl.u32 2131351028, %v1654
      %v1661 = vor.u32 %v1659, %v1660
      %v1662 = vshll.u32 2131351028, %v1653
      %v1663 = vshrl.u32 2102212464, %v1654
      %v1664 = vor.u32 %v1662, %v1663
      %v1665 = vshll.u32 2102212464, %v1653
      %v1666 = vshrl.u32 920167782, %v1654
      %v1667 = vor.u32 %v1665, %v1666
      %v1668 = vshll.u32 920167782, %v1653
      %v1669 = vshrl.u32 1326507024, %v1654
      %v1670 = vor.u32 %v1668, %v1669
      %vm1671 = vcmp.lt.s32.totalorder %v1652, 1
      %vm1672 = vcmp.lt.s32.totalorder %v1652, 2
      %vm1673 = vcmp.lt.s32.totalorder %v1652, 3
      %vm1674 = vcmp.lt.s32.totalorder %v1652, 4
      %v1675 = vsel %vm1671, %v1655, %v1658
      %v1676 = vsel %vm1674, %v1664, 2102212464
      %v1677 = vsel %vm1673, %v1661, %v1676
      %v1678 = vsel %vm1672, %v1675, %v1677
      %v1679 = vsel %vm1671, %v1658, %v1661
      %v1680 = vsel %vm1674, %v1667, 920167782
      %v1681 = vsel %vm1673, %v1664, %v1680
      %v1682 = vsel %vm1672, %v1679, %v1681
      %v1683 = vsel %vm1671, %v1661, %v1664
      %v1684 = vsel %vm1674, %v1670, 1326507024
      %v1685 = vsel %vm1673, %v1667, %v1684
      %v1686 = vsel %vm1672, %v1683, %v1685
      %v1687 = vshll.u32 %v1647, 8
      %v1688 = vmul.u32.u64.compose %v1687, %v1686
      %v1689 = vextract.low.u32 %v1688
      %v1690 = vextract.high.u32 %v1688
      %v1691 = vmul.u32.u64.compose %v1687, %v1682
      %v1692 = vextract.low.u32 %v1691
      %v1693 = vextract.high.u32 %v1691
      %v1694 = vmul.u32 %v1687, %v1678
      %v1695 = vadd.s32 %v1690, %v1692
      %vm1696 = vc.u32 %v1690, %v1692
      %v1697 = vadd.s32 %v1693, 1
      %v1698 = vsel %vm1696, %v1697, %v1693
      %v1699 = vadd.s32 %v1694, %v1698
      %v1700 = vadd.s32 %v1699, 536870912
      %v1701 = vshrl.u32 %v1700, 30
      %v1702 = vshll.u32 %v1701, 30
      %v1703 = vsub.s32 %v1699, %v1702
      %vm1704 = vcmp.lt.s32.totalorder %v1703, 0
      %v1705 = vsub.s32 0, %v1703
      %v1706 = vsel %vm1704, %v1705, %v1703
      %v1707 = vclz %v1706
      %v1708 = vsub.s32 %v1707, 2
      %vm1709 = vcmp.gt.s32.totalorder 0, %v1708
      %v1710 = vsel %vm1709, 0, %v1708
      %v1711 = vsub.s32 32, %v1710
      %v1712 = vshll.u32 %v1703, %v1710
      %v1713 = vshrl.u32 %v1695, %v1711
      %v1714 = vor.u32 %v1712, %v1713
      %v1715 = vsub.s32 4294967266, %v1710
      %v1716 = vadd.s32 %v1715, 127
      %v1717 = vshll.u32 %v1716, 23
      %v1718 = vor.u32 4788187, %v1717
      %v1719 = vand.u32 2147483647, %v1718
      %v1721 = vcvt.s32.f32 %v1714
      %v1722 = vmul.f32 %v1721, %v1719
      %v1723 = vxor.u32 %v1722, 2147483648
      %v1724 = vsel %vm1641, %v1723, %v1722
      %v1725 = vsub.s32 4, %v1701
      %v1726 = vsel %vm1641, %v1725, %v1701
      %v1727 = vsel %vm1640, %v473, %v1724
      %v1728 = vsel %vm1640, 0, %v1726
      %v1729 = vcosq.f32.pop %v1727
      %v1730 = vsinq.f32.pop %v1727
      %vm1731 = vweird.f32 %v473
      %v1732 = vand.u32 %v1728, 3
      %vm1733 = vcmp.lt.s32.totalorder %v1732, 2
      %vm1734 = vcmp.eq.s32.totalorder %v1732, 0
      %v1735 = vxor.u32 %v1730, 2147483648
      %v1736 = vsel %vm1734, %v1729, %v1735
      %vm1737 = vcmp.eq.s32.totalorder %v1732, 2
      %v1738 = vxor.u32 %v1729, 2147483648
      %v1739 = vsel %vm1737, %v1738, %v1730
      %v1740 = vsel %vm1733, %v1736, %v1739
      %v1741 = vsel %vm1731, nan, %v1740
      %v1742 = vand.u32 2147483647, %v474
      %vm1743 = vcmp.le.f32.partialorder %v1742, 0.7853982
      %vm1744 = vcmp.lt.s32.totalorder %v474, 0
      %v1745 = vand.u32 %v474, 2139095040
      %v1746 = vshrl.u32 %v1745, 23
      %v1747 = vsub.s32 %v1746, 127
      %v1748 = vand.u32 2147483647, %v474
      %v1749 = vand.u32 %v1748, 8388607
      %v1750 = vor.u32 %v1749, 8388608
      %v1751 = vsub.s32 0, %v1750
      %v1752 = vadd.s32 %v1747, 1
      %vm1753 = vcmp.gt.s32.totalorder %v1752, 0
      %v1754 = vsel %vm1753, %v1752, 0
      %v1755 = vshrl.u32 %v1754, 5
      %v1756 = vand.u32 %v1754, 31
      %v1757 = vsub.s32 32, %v1756
      %v1758 = vshrl.u32 683565275, %v1757
      %v1759 = vshll.u32 683565275, %v1756
      %v1760 = vshrl.u32 2475754826, %v1757
      %v1761 = vor.u32 %v1759, %v1760
      %v1762 = vshll.u32 2475754826, %v1756
      %v1763 = vshrl.u32 2131351028, %v1757
      %v1764 = vor.u32 %v1762, %v1763
      %v1765 = vshll.u32 2131351028, %v1756
      %v1766 = vshrl.u32 2102212464, %v1757
      %v1767 = vor.u32 %v1765, %v1766
      %v1768 = vshll.u32 2102212464, %v1756
      %v1769 = vshrl.u32 920167782, %v1757
      %v1770 = vor.u32 %v1768, %v1769
      %v1771 = vshll.u32 920167782, %v1756
      %v1772 = vshrl.u32 1326507024, %v1757
      %v1773 = vor.u32 %v1771, %v1772
      %vm1774 = vcmp.lt.s32.totalorder %v1755, 1
      %vm1775 = vcmp.lt.s32.totalorder %v1755, 2
      %vm1776 = vcmp.lt.s32.totalorder %v1755, 3
      %vm1777 = vcmp.lt.s32.totalorder %v1755, 4
      %v1778 = vsel %vm1774, %v1758, %v1761
      %v1779 = vsel %vm1777, %v1767, 2102212464
      %v1780 = vsel %vm1776, %v1764, %v1779
      %v1781 = vsel %vm1775, %v1778, %v1780
      %v1782 = vsel %vm1774, %v1761, %v1764
      %v1783 = vsel %vm1777, %v1770, 920167782
      %v1784 = vsel %vm1776, %v1767, %v1783
      %v1785 = vsel %vm1775, %v1782, %v1784
      %v1786 = vsel %vm1774, %v1764, %v1767
      %v1787 = vsel %vm1777, %v1773, 1326507024
      %v1788 = vsel %vm1776, %v1770, %v1787
      %v1789 = vsel %vm1775, %v1786, %v1788
      %v1790 = vshll.u32 %v1750, 8
      %v1791 = vmul.u32.u64.compose %v1790, %v1789
      %v1792 = vextract.low.u32 %v1791
      %v1793 = vextract.high.u32 %v1791
      %v1794 = vmul.u32.u64.compose %v1790, %v1785
      %v1795 = vextract.low.u32 %v1794
      %v1796 = vextract.high.u32 %v1794
      %v1797 = vmul.u32 %v1790, %v1781
      %v1798 = vadd.s32 %v1793, %v1795
      %vm1799 = vc.u32 %v1793, %v1795
      %v1800 = vadd.s32 %v1796, 1
      %v1801 = vsel %vm1799, %v1800, %v1796
      %v1802 = vadd.s32 %v1797, %v1801
      %v1803 = vadd.s32 %v1802, 536870912
      %v1804 = vshrl.u32 %v1803, 30
      %v1805 = vshll.u32 %v1804, 30
      %v1806 = vsub.s32 %v1802, %v1805
      %vm1807 = vcmp.lt.s32.totalorder %v1806, 0
      %v1808 = vsub.s32 0, %v1806
      %v1809 = vsel %vm1807, %v1808, %v1806
      %v1810 = vclz %v1809
      %v1811 = vsub.s32 %v1810, 2
      %vm1812 = vcmp.gt.s32.totalorder 0, %v1811
      %v1813 = vsel %vm1812, 0, %v1811
      %v1814 = vsub.s32 32, %v1813
      %v1815 = vshll.u32 %v1806, %v1813
      %v1816 = vshrl.u32 %v1798, %v1814
      %v1817 = vor.u32 %v1815, %v1816
      %v1818 = vsub.s32 4294967266, %v1813
      %v1819 = vadd.s32 %v1818, 127
      %v1820 = vshll.u32 %v1819, 23
      %v1821 = vor.u32 4788187, %v1820
      %v1822 = vand.u32 2147483647, %v1821
      %v1824 = vcvt.s32.f32 %v1817
      %v1825 = vmul.f32 %v1824, %v1822
      %v1826 = vxor.u32 %v1825, 2147483648
      %v1827 = vsel %vm1744, %v1826, %v1825
      %v1828 = vsub.s32 4, %v1804
      %v1829 = vsel %vm1744, %v1828, %v1804
      %v1830 = vsel %vm1743, %v474, %v1827
      %v1831 = vsel %vm1743, 0, %v1829
      %v1832 = vcosq.f32.pop %v1830
      %v1833 = vsinq.f32.pop %v1830
      %vm1834 = vweird.f32 %v474
      %v1835 = vand.u32 %v1831, 3
      %vm1836 = vcmp.lt.s32.totalorder %v1835, 2
      %vm1837 = vcmp.eq.s32.totalorder %v1835, 0
      %v1838 = vxor.u32 %v1833, 2147483648
      %v1839 = vsel %vm1837, %v1832, %v1838
      %vm1840 = vcmp.eq.s32.totalorder %v1835, 2
      %v1841 = vxor.u32 %v1832, 2147483648
      %v1842 = vsel %vm1840, %v1841, %v1833
      %v1843 = vsel %vm1836, %v1839, %v1842
      %v1844 = vsel %vm1834, nan, %v1843
      %v1845 = vand.u32 2147483647, %v475
      %vm1846 = vcmp.le.f32.partialorder %v1845, 0.7853982
      %vm1847 = vcmp.lt.s32.totalorder %v475, 0
      %v1848 = vand.u32 %v475, 2139095040
      %v1849 = vshrl.u32 %v1848, 23
      %v1850 = vsub.s32 %v1849, 127
      %v1851 = vand.u32 2147483647, %v475
      %v1852 = vand.u32 %v1851, 8388607
      %v1853 = vor.u32 %v1852, 8388608
      %v1854 = vsub.s32 0, %v1853
      %v1855 = vadd.s32 %v1850, 1
      %vm1856 = vcmp.gt.s32.totalorder %v1855, 0
      %v1857 = vsel %vm1856, %v1855, 0
      %v1858 = vshrl.u32 %v1857, 5
      %v1859 = vand.u32 %v1857, 31
      %v1860 = vsub.s32 32, %v1859
      %v1861 = vshrl.u32 683565275, %v1860
      %v1862 = vshll.u32 683565275, %v1859
      %v1863 = vshrl.u32 2475754826, %v1860
      %v1864 = vor.u32 %v1862, %v1863
      %v1865 = vshll.u32 2475754826, %v1859
      %v1866 = vshrl.u32 2131351028, %v1860
      %v1867 = vor.u32 %v1865, %v1866
      %v1868 = vshll.u32 2131351028, %v1859
      %v1869 = vshrl.u32 2102212464, %v1860
      %v1870 = vor.u32 %v1868, %v1869
      %v1871 = vshll.u32 2102212464, %v1859
      %v1872 = vshrl.u32 920167782, %v1860
      %v1873 = vor.u32 %v1871, %v1872
      %v1874 = vshll.u32 920167782, %v1859
      %v1875 = vshrl.u32 1326507024, %v1860
      %v1876 = vor.u32 %v1874, %v1875
      %vm1877 = vcmp.lt.s32.totalorder %v1858, 1
      %vm1878 = vcmp.lt.s32.totalorder %v1858, 2
      %vm1879 = vcmp.lt.s32.totalorder %v1858, 3
      %vm1880 = vcmp.lt.s32.totalorder %v1858, 4
      %v1881 = vsel %vm1877, %v1861, %v1864
      %v1882 = vsel %vm1880, %v1870, 2102212464
      %v1883 = vsel %vm1879, %v1867, %v1882
      %v1884 = vsel %vm1878, %v1881, %v1883
      %v1885 = vsel %vm1877, %v1864, %v1867
      %v1886 = vsel %vm1880, %v1873, 920167782
      %v1887 = vsel %vm1879, %v1870, %v1886
      %v1888 = vsel %vm1878, %v1885, %v1887
      %v1889 = vsel %vm1877, %v1867, %v1870
      %v1890 = vsel %vm1880, %v1876, 1326507024
      %v1891 = vsel %vm1879, %v1873, %v1890
      %v1892 = vsel %vm1878, %v1889, %v1891
      %v1893 = vshll.u32 %v1853, 8
      %v1894 = vmul.u32.u64.compose %v1893, %v1892
      %v1895 = vextract.low.u32 %v1894
      %v1896 = vextract.high.u32 %v1894
      %v1897 = vmul.u32.u64.compose %v1893, %v1888
      %v1898 = vextract.low.u32 %v1897
      %v1899 = vextract.high.u32 %v1897
      %v1900 = vmul.u32 %v1893, %v1884
      %v1901 = vadd.s32 %v1896, %v1898
      %vm1902 = vc.u32 %v1896, %v1898
      %v1903 = vadd.s32 %v1899, 1
      %v1904 = vsel %vm1902, %v1903, %v1899
      %v1905 = vadd.s32 %v1900, %v1904
      %v1906 = vadd.s32 %v1905, 536870912
      %v1907 = vshrl.u32 %v1906, 30
      %v1908 = vshll.u32 %v1907, 30
      %v1909 = vsub.s32 %v1905, %v1908
      %vm1910 = vcmp.lt.s32.totalorder %v1909, 0
      %v1911 = vsub.s32 0, %v1909
      %v1912 = vsel %vm1910, %v1911, %v1909
      %v1913 = vclz %v1912
      %v1914 = vsub.s32 %v1913, 2
      %vm1915 = vcmp.gt.s32.totalorder 0, %v1914
      %v1916 = vsel %vm1915, 0, %v1914
      %v1917 = vsub.s32 32, %v1916
      %v1918 = vshll.u32 %v1909, %v1916
      %v1919 = vshrl.u32 %v1901, %v1917
      %v1920 = vor.u32 %v1918, %v1919
      %v1921 = vsub.s32 4294967266, %v1916
      %v1922 = vadd.s32 %v1921, 127
      %v1923 = vshll.u32 %v1922, 23
      %v1924 = vor.u32 4788187, %v1923
      %v1925 = vand.u32 2147483647, %v1924
      %v1927 = vcvt.s32.f32 %v1920
      %v1928 = vmul.f32 %v1927, %v1925
      %v1929 = vxor.u32 %v1928, 2147483648
      %v1930 = vsel %vm1847, %v1929, %v1928
      %v1931 = vsub.s32 4, %v1907
      %v1932 = vsel %vm1847, %v1931, %v1907
      %v1933 = vsel %vm1846, %v475, %v1930
      %v1934 = vsel %vm1846, 0, %v1932
      %v1935 = vcosq.f32.pop %v1933
      %v1936 = vsinq.f32.pop %v1933
      %vm1937 = vweird.f32 %v475
      %v1938 = vand.u32 %v1934, 3
      %vm1939 = vcmp.lt.s32.totalorder %v1938, 2
      %vm1940 = vcmp.eq.s32.totalorder %v1938, 0
      %v1941 = vxor.u32 %v1936, 2147483648
      %v1942 = vsel %vm1940, %v1935, %v1941
      %vm1943 = vcmp.eq.s32.totalorder %v1938, 2
      %v1944 = vxor.u32 %v1935, 2147483648
      %v1945 = vsel %vm1943, %v1944, %v1936
      %v1946 = vsel %vm1939, %v1942, %v1945
      %v1947 = vsel %vm1937, nan, %v1946
      %v1948 = vand.u32 2147483647, %v476
      %vm1949 = vcmp.le.f32.partialorder %v1948, 0.7853982
      %vm1950 = vcmp.lt.s32.totalorder %v476, 0
      %v1951 = vand.u32 %v476, 2139095040
      %v1952 = vshrl.u32 %v1951, 23
      %v1953 = vsub.s32 %v1952, 127
      %v1954 = vand.u32 2147483647, %v476
      %v1955 = vand.u32 %v1954, 8388607
      %v1956 = vor.u32 %v1955, 8388608
      %v1957 = vsub.s32 0, %v1956
      %v1958 = vadd.s32 %v1953, 1
      %vm1959 = vcmp.gt.s32.totalorder %v1958, 0
      %v1960 = vsel %vm1959, %v1958, 0
      %v1961 = vshrl.u32 %v1960, 5
      %v1962 = vand.u32 %v1960, 31
      %v1963 = vsub.s32 32, %v1962
      %v1964 = vshrl.u32 683565275, %v1963
      %v1965 = vshll.u32 683565275, %v1962
      %v1966 = vshrl.u32 2475754826, %v1963
      %v1967 = vor.u32 %v1965, %v1966
      %v1968 = vshll.u32 2475754826, %v1962
      %v1969 = vshrl.u32 2131351028, %v1963
      %v1970 = vor.u32 %v1968, %v1969
      %v1971 = vshll.u32 2131351028, %v1962
      %v1972 = vshrl.u32 2102212464, %v1963
      %v1973 = vor.u32 %v1971, %v1972
      %v1974 = vshll.u32 2102212464, %v1962
      %v1975 = vshrl.u32 920167782, %v1963
      %v1976 = vor.u32 %v1974, %v1975
      %v1977 = vshll.u32 920167782, %v1962
      %v1978 = vshrl.u32 1326507024, %v1963
      %v1979 = vor.u32 %v1977, %v1978
      %vm1980 = vcmp.lt.s32.totalorder %v1961, 1
      %vm1981 = vcmp.lt.s32.totalorder %v1961, 2
      %vm1982 = vcmp.lt.s32.totalorder %v1961, 3
      %vm1983 = vcmp.lt.s32.totalorder %v1961, 4
      %v1984 = vsel %vm1980, %v1964, %v1967
      %v1985 = vsel %vm1983, %v1973, 2102212464
      %v1986 = vsel %vm1982, %v1970, %v1985
      %v1987 = vsel %vm1981, %v1984, %v1986
      %v1988 = vsel %vm1980, %v1967, %v1970
      %v1989 = vsel %vm1983, %v1976, 920167782
      %v1990 = vsel %vm1982, %v1973, %v1989
      %v1991 = vsel %vm1981, %v1988, %v1990
      %v1992 = vsel %vm1980, %v1970, %v1973
      %v1993 = vsel %vm1983, %v1979, 1326507024
      %v1994 = vsel %vm1982, %v1976, %v1993
      %v1995 = vsel %vm1981, %v1992, %v1994
      %v1996 = vshll.u32 %v1956, 8
      %v1997 = vmul.u32.u64.compose %v1996, %v1995
      %v1998 = vextract.low.u32 %v1997
      %v1999 = vextract.high.u32 %v1997
      %v2000 = vmul.u32.u64.compose %v1996, %v1991
      %v2001 = vextract.low.u32 %v2000
      %v2002 = vextract.high.u32 %v2000
      %v2003 = vmul.u32 %v1996, %v1987
      %v2004 = vadd.s32 %v1999, %v2001
      %vm2005 = vc.u32 %v1999, %v2001
      %v2006 = vadd.s32 %v2002, 1
      %v2007 = vsel %vm2005, %v2006, %v2002
      %v2008 = vadd.s32 %v2003, %v2007
      %v2009 = vadd.s32 %v2008, 536870912
      %v2010 = vshrl.u32 %v2009, 30
      %v2011 = vshll.u32 %v2010, 30
      %v2012 = vsub.s32 %v2008, %v2011
      %vm2013 = vcmp.lt.s32.totalorder %v2012, 0
      %v2014 = vsub.s32 0, %v2012
      %v2015 = vsel %vm2013, %v2014, %v2012
      %v2016 = vclz %v2015
      %v2017 = vsub.s32 %v2016, 2
      %vm2018 = vcmp.gt.s32.totalorder 0, %v2017
      %v2019 = vsel %vm2018, 0, %v2017
      %v2020 = vsub.s32 32, %v2019
      %v2021 = vshll.u32 %v2012, %v2019
      %v2022 = vshrl.u32 %v2004, %v2020
      %v2023 = vor.u32 %v2021, %v2022
      %v2024 = vsub.s32 4294967266, %v2019
      %v2025 = vadd.s32 %v2024, 127
      %v2026 = vshll.u32 %v2025, 23
      %v2027 = vor.u32 4788187, %v2026
      %v2028 = vand.u32 2147483647, %v2027
      %v2030 = vcvt.s32.f32 %v2023
      %v2031 = vmul.f32 %v2030, %v2028
      %v2032 = vxor.u32 %v2031, 2147483648
      %v2033 = vsel %vm1950, %v2032, %v2031
      %v2034 = vsub.s32 4, %v2010
      %v2035 = vsel %vm1950, %v2034, %v2010
      %v2036 = vsel %vm1949, %v476, %v2033
      %v2037 = vsel %vm1949, 0, %v2035
      %v2038 = vcosq.f32.pop %v2036
      %v2039 = vsinq.f32.pop %v2036
      %vm2040 = vweird.f32 %v476
      %v2041 = vand.u32 %v2037, 3
      %vm2042 = vcmp.lt.s32.totalorder %v2041, 2
      %vm2043 = vcmp.eq.s32.totalorder %v2041, 0
      %v2044 = vxor.u32 %v2039, 2147483648
      %v2045 = vsel %vm2043, %v2038, %v2044
      %vm2046 = vcmp.eq.s32.totalorder %v2041, 2
      %v2047 = vxor.u32 %v2038, 2147483648
      %v2048 = vsel %vm2046, %v2047, %v2039
      %v2049 = vsel %vm2042, %v2045, %v2048
      %v2050 = vsel %vm2040, nan, %v2049
      %v2051 = vand.u32 2147483647, %v477
      %vm2052 = vcmp.le.f32.partialorder %v2051, 0.7853982
      %vm2053 = vcmp.lt.s32.totalorder %v477, 0
      %v2054 = vand.u32 %v477, 2139095040
      %v2055 = vshrl.u32 %v2054, 23
      %v2056 = vsub.s32 %v2055, 127
      %v2057 = vand.u32 2147483647, %v477
      %v2058 = vand.u32 %v2057, 8388607
      %v2059 = vor.u32 %v2058, 8388608
      %v2060 = vsub.s32 0, %v2059
      %v2061 = vadd.s32 %v2056, 1
      %vm2062 = vcmp.gt.s32.totalorder %v2061, 0
      %v2063 = vsel %vm2062, %v2061, 0
      %v2064 = vshrl.u32 %v2063, 5
      %v2065 = vand.u32 %v2063, 31
      %v2066 = vsub.s32 32, %v2065
      %v2067 = vshrl.u32 683565275, %v2066
      %v2068 = vshll.u32 683565275, %v2065
      %v2069 = vshrl.u32 2475754826, %v2066
      %v2070 = vor.u32 %v2068, %v2069
      %v2071 = vshll.u32 2475754826, %v2065
      %v2072 = vshrl.u32 2131351028, %v2066
      %v2073 = vor.u32 %v2071, %v2072
      %v2074 = vshll.u32 2131351028, %v2065
      %v2075 = vshrl.u32 2102212464, %v2066
      %v2076 = vor.u32 %v2074, %v2075
      %v2077 = vshll.u32 2102212464, %v2065
      %v2078 = vshrl.u32 920167782, %v2066
      %v2079 = vor.u32 %v2077, %v2078
      %v2080 = vshll.u32 920167782, %v2065
      %v2081 = vshrl.u32 1326507024, %v2066
      %v2082 = vor.u32 %v2080, %v2081
      %vm2083 = vcmp.lt.s32.totalorder %v2064, 1
      %vm2084 = vcmp.lt.s32.totalorder %v2064, 2
      %vm2085 = vcmp.lt.s32.totalorder %v2064, 3
      %vm2086 = vcmp.lt.s32.totalorder %v2064, 4
      %v2087 = vsel %vm2083, %v2067, %v2070
      %v2088 = vsel %vm2086, %v2076, 2102212464
      %v2089 = vsel %vm2085, %v2073, %v2088
      %v2090 = vsel %vm2084, %v2087, %v2089
      %v2091 = vsel %vm2083, %v2070, %v2073
      %v2092 = vsel %vm2086, %v2079, 920167782
      %v2093 = vsel %vm2085, %v2076, %v2092
      %v2094 = vsel %vm2084, %v2091, %v2093
      %v2095 = vsel %vm2083, %v2073, %v2076
      %v2096 = vsel %vm2086, %v2082, 1326507024
      %v2097 = vsel %vm2085, %v2079, %v2096
      %v2098 = vsel %vm2084, %v2095, %v2097
      %v2099 = vshll.u32 %v2059, 8
      %v2100 = vmul.u32.u64.compose %v2099, %v2098
      %v2101 = vextract.low.u32 %v2100
      %v2102 = vextract.high.u32 %v2100
      %v2103 = vmul.u32.u64.compose %v2099, %v2094
      %v2104 = vextract.low.u32 %v2103
      %v2105 = vextract.high.u32 %v2103
      %v2106 = vmul.u32 %v2099, %v2090
      %v2107 = vadd.s32 %v2102, %v2104
      %vm2108 = vc.u32 %v2102, %v2104
      %v2109 = vadd.s32 %v2105, 1
      %v2110 = vsel %vm2108, %v2109, %v2105
      %v2111 = vadd.s32 %v2106, %v2110
      %v2112 = vadd.s32 %v2111, 536870912
      %v2113 = vshrl.u32 %v2112, 30
      %v2114 = vshll.u32 %v2113, 30
      %v2115 = vsub.s32 %v2111, %v2114
      %vm2116 = vcmp.lt.s32.totalorder %v2115, 0
      %v2117 = vsub.s32 0, %v2115
      %v2118 = vsel %vm2116, %v2117, %v2115
      %v2119 = vclz %v2118
      %v2120 = vsub.s32 %v2119, 2
      %vm2121 = vcmp.gt.s32.totalorder 0, %v2120
      %v2122 = vsel %vm2121, 0, %v2120
      %v2123 = vsub.s32 32, %v2122
      %v2124 = vshll.u32 %v2115, %v2122
      %v2125 = vshrl.u32 %v2107, %v2123
      %v2126 = vor.u32 %v2124, %v2125
      %v2127 = vsub.s32 4294967266, %v2122
      %v2128 = vadd.s32 %v2127, 127
      %v2129 = vshll.u32 %v2128, 23
      %v2130 = vor.u32 4788187, %v2129
      %v2131 = vand.u32 2147483647, %v2130
      %v2133 = vcvt.s32.f32 %v2126
      %v2134 = vmul.f32 %v2133, %v2131
      %v2135 = vxor.u32 %v2134, 2147483648
      %v2136 = vsel %vm2053, %v2135, %v2134
      %v2137 = vsub.s32 4, %v2113
      %v2138 = vsel %vm2053, %v2137, %v2113
      %v2139 = vsel %vm2052, %v477, %v2136
      %v2140 = vsel %vm2052, 0, %v2138
      %v2141 = vcosq.f32.pop %v2139
      %v2142 = vsinq.f32.pop %v2139
      %vm2143 = vweird.f32 %v477
      %v2144 = vand.u32 %v2140, 3
      %vm2145 = vcmp.lt.s32.totalorder %v2144, 2
      %vm2146 = vcmp.eq.s32.totalorder %v2144, 0
      %v2147 = vxor.u32 %v2142, 2147483648
      %v2148 = vsel %vm2146, %v2141, %v2147
      %vm2149 = vcmp.eq.s32.totalorder %v2144, 2
      %v2150 = vxor.u32 %v2141, 2147483648
      %v2151 = vsel %vm2149, %v2150, %v2142
      %v2152 = vsel %vm2145, %v2148, %v2151
      %v2153 = vsel %vm2143, nan, %v2152
      %v2154 = vmul.f32 %v1432, %v478
      %v2155 = vmul.f32 %v1535, %v479
      %v2156 = vmul.f32 %v1638, %v480
      %v2157 = vmul.f32 %v1741, %v481
      %v2158 = vmul.f32 %v1844, %v482
      %v2159 = vmul.f32 %v1947, %v483
      %v2160 = vmul.f32 %v2050, %v484
      %v2161 = vmul.f32 %v2153, %v485
      %v2162 = vpack.c.bf16 %v2155, %v2154
      %v2163 = vpack.c.bf16 %v2157, %v2156
      %v2164 = vpack.c.bf16 %v2159, %v2158
      %v2165 = vpack.c.bf16 %v2161, %v2160
      %v2166 = vpack.c.bf16 %v479, %v478
      %v2167 = vpack.c.bf16 %v481, %v480
      %v2168 = vpack.c.bf16 %v483, %v482
      %v2169 = vpack.c.bf16 %v485, %v484
      %v2170 = vld [vmem:[%s3] sm:$0xf]
      %v2171 = vld [vmem:[%s3 + $0x4] sm:$0xf]
      %v2172 = vld [vmem:[%s3 + $0x8] sm:$0x7]
      %v2173 = vld [vmem:[%s4] sm:$0x3]
      %vm2174 = vcmask 31744
      %v2176 = vsel %vm2174, %v1326, 0
      %v2179 = vsel %vm2174, %v1327, 0
      %v2182 = vsel %vm2174, %v1328, 0
      %v2185 = vsel %vm2174, %v1329, 0
      %vm2187 = vcmask 1041408
      %v2189 = vsel %vm2187, %v2173, 0
      %2191 = vmatprep.subr.bf16.mxu0 0
      %2192 = vmatpush1.bf16.msra.mxu0 %v2189
      %2193 = vmatprep.subr.bf16.mxu0 0
      %2194 = vmatpush1.bf16.msra.mxu0 0
      %2195 = vmatprep.subr.bf16.mxu0 0
      %2196 = vmatpush1.bf16.msra.mxu0 0
      %2197 = vmatprep.subr.bf16.mxu0 0
      %2198 = vmatpush1.bf16.msra.mxu0 0
      %2199 = vmatprep.subr.bf16.mxu0 0
      %2200 = vmatpush1.bf16.msra.mxu0 0
      %2201 = vmatprep.subr.bf16.mxu0 0
      %2202 = vmatpush1.bf16.msra.mxu0 0
      %2203 = vmatprep.subr.bf16.mxu0 0
      %2204 = vmatpush1.bf16.msra.mxu0 0
      %2205 = vmatprep.subr.bf16.mxu0 0
      %2206 = vmatpush1.bf16.msra.mxu0 0
      %2207 = vmatprep.subr.bf16.mxu0 0
      %2208 = vmatpush1.bf16.msra.mxu0 0
      %2209 = vmatprep.subr.bf16.mxu0 0
      %2210 = vmatpush1.bf16.msra.mxu0 0
      %2211 = vmatprep.subr.bf16.mxu0 0
      %2212 = vmatpush1.bf16.msra.mxu0 0
      %2213 = vmatprep.subr.bf16.mxu0 0
      %2214 = vmatpush1.bf16.msra.mxu0 0
      %2215 = vmatprep.subr.bf16.mxu0 0
      %2216 = vmatpush1.bf16.msra.mxu0 0
      %2217 = vmatprep.subr.bf16.mxu0 0
      %2218 = vmatpush1.bf16.msra.mxu0 0
      %2219 = vmatprep.subr.bf16.mxu0 0
      %2220 = vmatpush1.bf16.msra.mxu0 0
      %2221 = vmatprep.subr.bf16.mxu0 0
      %2222 = vmatpush1.bf16.msra.mxu0 0
      %2223 = vmatprep.mubr.bf16.mxu0 0
      %2224 = vmatmul.mubr.bf16.gmra.mrb[0].mxu0 %v2176
      %v2225 = vpop.f32.mrb[0].mxu0
      %v2226 = vadd.f32 0.0, %v2225
      %v2227 = vpop.f32.mrb[0].mxu0
      %v2228 = vpop.f32.mrb[0].mxu0
      %v2229 = vadd.f32 0.0, %v2228
      %v2230 = vpop.f32.mrb[0].mxu0
      %2231 = vmatprep.mubr.bf16.mxu0 0
      %2232 = vmatmul.mubr.bf16.gmra.mrb[0].mxu0 %v2179
      %v2233 = vpop.f32.mrb[0].mxu0
      %v2234 = vadd.f32 0.0, %v2233
      %v2235 = vpop.f32.mrb[0].mxu0
      %v2236 = vpop.f32.mrb[0].mxu0
      %v2237 = vadd.f32 0.0, %v2236
      %v2238 = vpop.f32.mrb[0].mxu0
      %2239 = vmatprep.mubr.bf16.mxu0 0
      %2240 = vmatmul.mubr.bf16.gmra.mrb[0].mxu0 %v2182
      %v2241 = vpop.f32.mrb[0].mxu0
      %v2242 = vadd.f32 0.0, %v2241
      %v2243 = vpop.f32.mrb[0].mxu0
      %v2244 = vpop.f32.mrb[0].mxu0
      %v2245 = vadd.f32 0.0, %v2244
      %v2246 = vpop.f32.mrb[0].mxu0
      %2247 = vmatprep.mubr.bf16.mxu0 0
      %2248 = vmatmul.mubr.bf16.gmra.mrb[0].mxu0 %v2185
      %v2249 = vpop.f32.mrb[0].mxu0
      %v2250 = vadd.f32 0.0, %v2249
      %v2251 = vpop.f32.mrb[0].mxu0
      %v2252 = vpop.f32.mrb[0].mxu0
      %v2253 = vadd.f32 0.0, %v2252
      %v2254 = vpop.f32.mrb[0].mxu0
      %2255 = vdwg.mxu0
      %v2259 = vunpack.c.l.b16 %v2170
      %v2260 = vunpack.c.l.b16 %v2171
      %v2261 = vunpack.c.l.b16 %v2172
      %v2262 = vpack.c.b16 %v2260, %v2259
      %v2263 = vpack.c.b16 %v2261, %v2261
      %vm2265 = vcmask 179200
      %v2267 = vsel %vm2265, %v466, 0
      %v2270 = vsel %vm2265, %v467, 0
      %v2273 = vsel %vm2265, %v468, 0
      %v2276 = vsel %vm2265, %v469, 0
      %vm2278 = vcmask 1042432
      %v2280 = vsel %vm2278, %v2263, 0
      %2282 = vmatprep.subr.bf16.mxu0 0
      %2283 = vmatpush1.bf16.msra.mxu0 %v2262
      %2284 = vmatprep.subr.bf16.mxu0 0
      %2285 = vmatpush1.bf16.msra.mxu0 %v2280
      %2286 = vmatprep.subr.bf16.mxu0 0
      %2287 = vmatpush1.bf16.msra.mxu0 0
      %2288 = vmatprep.subr.bf16.mxu0 0
      %2289 = vmatpush1.bf16.msra.mxu0 0
      %2290 = vmatprep.subr.bf16.mxu0 0
      %2291 = vmatpush1.bf16.msra.mxu0 0
      %2292 = vmatprep.subr.bf16.mxu0 0
      %2293 = vmatpush1.bf16.msra.mxu0 0
      %2294 = vmatprep.subr.bf16.mxu0 0
      %2295 = vmatpush1.bf16.msra.mxu0 0
      %2296 = vmatprep.subr.bf16.mxu0 0
      %2297 = vmatpush1.bf16.msra.mxu0 0
      %2298 = vmatprep.subr.bf16.mxu0 0
      %2299 = vmatpush1.bf16.msra.mxu0 0
      %2300 = vmatprep.subr.bf16.mxu0 0
      %2301 = vmatpush1.bf16.msra.mxu0 0
      %2302 = vmatprep.subr.bf16.mxu0 0
      %2303 = vmatpush1.bf16.msra.mxu0 0
      %2304 = vmatprep.subr.bf16.mxu0 0
      %2305 = vmatpush1.bf16.msra.mxu0 0
      %2306 = vmatprep.subr.bf16.mxu0 0
      %2307 = vmatpush1.bf16.msra.mxu0 0
      %2308 = vmatprep.subr.bf16.mxu0 0
      %2309 = vmatpush1.bf16.msra.mxu0 0
      %2310 = vmatprep.subr.bf16.mxu0 0
      %2311 = vmatpush1.bf16.msra.mxu0 0
      %2312 = vmatprep.subr.bf16.mxu0 0
      %2313 = vmatpush1.bf16.msra.mxu0 0
      %2314 = vmatprep.mubr.bf16.mxu0 0
      %2315 = vmatmul.mubr.bf16.gmra.mrb[0].mxu0 %v2267
      %v2316 = vpop.f32.mrb[0].mxu0
      %v2317 = vadd.f32 %v2226, %v2316
      %v2318 = vpop.f32.mrb[0].mxu0
      %v2319 = vpop.f32.mrb[0].mxu0
      %v2320 = vadd.f32 %v2229, %v2319
      %v2321 = vpop.f32.mrb[0].mxu0
      %2322 = vmatprep.mubr.bf16.mxu0 0
      %2323 = vmatmul.mubr.bf16.gmra.mrb[0].mxu0 %v2270
      %v2324 = vpop.f32.mrb[0].mxu0
      %v2325 = vadd.f32 %v2234, %v2324
      %v2326 = vpop.f32.mrb[0].mxu0
      %v2327 = vpop.f32.mrb[0].mxu0
      %v2328 = vadd.f32 %v2237, %v2327
      %v2329 = vpop.f32.mrb[0].mxu0
      %2330 = vmatprep.mubr.bf16.mxu0 0
      %2331 = vmatmul.mubr.bf16.gmra.mrb[0].mxu0 %v2273
      %v2332 = vpop.f32.mrb[0].mxu0
      %v2333 = vadd.f32 %v2242, %v2332
      %v2334 = vpop.f32.mrb[0].mxu0
      %v2335 = vpop.f32.mrb[0].mxu0
      %v2336 = vadd.f32 %v2245, %v2335
      %v2337 = vpop.f32.mrb[0].mxu0
      %2338 = vmatprep.mubr.bf16.mxu0 0
      %2339 = vmatmul.mubr.bf16.gmra.mrb[0].mxu0 %v2276
      %v2340 = vpop.f32.mrb[0].mxu0
      %v2341 = vadd.f32 %v2250, %v2340
      %v2342 = vpop.f32.mrb[0].mxu0
      %v2343 = vpop.f32.mrb[0].mxu0
      %v2344 = vadd.f32 %v2253, %v2343
      %v2345 = vpop.f32.mrb[0].mxu0
      %2346 = vdwg.mxu0
      %v2347 = vld [vmem:[%s5] sm:$0x3]
      %v2349 = vsel %vm2174, %v2162, 0
      %v2352 = vsel %vm2174, %v2163, 0
      %v2355 = vsel %vm2174, %v2164, 0
      %v2358 = vsel %vm2174, %v2165, 0
      %v2361 = vsel %vm2187, %v2347, 0
      %2363 = vmatprep.subr.bf16.mxu0 0
      %2364 = vmatpush1.bf16.msra.mxu0 %v2361
      %2365 = vmatprep.subr.bf16.mxu0 0
      %2366 = vmatpush1.bf16.msra.mxu0 0
      %2367 = vmatprep.subr.bf16.mxu0 0
      %2368 = vmatpush1.bf16.msra.mxu0 0
      %2369 = vmatprep.subr.bf16.mxu0 0
      %2370 = vmatpush1.bf16.msra.mxu0 0
      %2371 = vmatprep.subr.bf16.mxu0 0
      %2372 = vmatpush1.bf16.msra.mxu0 0
      %2373 = vmatprep.subr.bf16.mxu0 0
      %2374 = vmatpush1.bf16.msra.mxu0 0
      %2375 = vmatprep.subr.bf16.mxu0 0
      %2376 = vmatpush1.bf16.msra.mxu0 0
      %2377 = vmatprep.subr.bf16.mxu0 0
      %2378 = vmatpush1.bf16.msra.mxu0 0
      %2379 = vmatprep.subr.bf16.mxu0 0
      %2380 = vmatpush1.bf16.msra.mxu0 0
      %2381 = vmatprep.subr.bf16.mxu0 0
      %2382 = vmatpush1.bf16.msra.mxu0 0
      %2383 = vmatprep.subr.bf16.mxu0 0
      %2384 = vmatpush1.bf16.msra.mxu0 0
      %2385 = vmatprep.subr.bf16.mxu0 0
      %2386 = vmatpush1.bf16.msra.mxu0 0
      %2387 = vmatprep.subr.bf16.mxu0 0
      %2388 = vmatpush1.bf16.msra.mxu0 0
      %2389 = vmatprep.subr.bf16.mxu0 0
      %2390 = vmatpush1.bf16.msra.mxu0 0
      %2391 = vmatprep.subr.bf16.mxu0 0
      %2392 = vmatpush1.bf16.msra.mxu0 0
      %2393 = vmatprep.subr.bf16.mxu0 0
      %2394 = vmatpush1.bf16.msra.mxu0 0
      %2395 = vmatprep.mubr.bf16.mxu0 0
      %2396 = vmatmul.mubr.bf16.gmra.mrb[0].mxu0 %v2349
      %v2397 = vpop.f32.mrb[0].mxu0
      %v2398 = vadd.f32 0.0, %v2397
      %v2399 = vpop.f32.mrb[0].mxu0
      %v2400 = vpop.f32.mrb[0].mxu0
      %v2401 = vadd.f32 0.0, %v2400
      %v2402 = vpop.f32.mrb[0].mxu0
      %2403 = vmatprep.mubr.bf16.mxu0 0
      %2404 = vmatmul.mubr.bf16.gmra.mrb[0].mxu0 %v2352
      %v2405 = vpop.f32.mrb[0].mxu0
      %v2406 = vadd.f32 0.0, %v2405
      %v2407 = vpop.f32.mrb[0].mxu0
      %v2408 = vpop.f32.mrb[0].mxu0
      %v2409 = vadd.f32 0.0, %v2408
      %v2410 = vpop.f32.mrb[0].mxu0
      %2411 = vmatprep.mubr.bf16.mxu0 0
      %2412 = vmatmul.mubr.bf16.gmra.mrb[0].mxu0 %v2355
      %v2413 = vpop.f32.mrb[0].mxu0
      %v2414 = vadd.f32 0.0, %v2413
      %v2415 = vpop.f32.mrb[0].mxu0
      %v2416 = vpop.f32.mrb[0].mxu0
      %v2417 = vadd.f32 0.0, %v2416
      %v2418 = vpop.f32.mrb[0].mxu0
      %2419 = vmatprep.mubr.bf16.mxu0 0
      %2420 = vmatmul.mubr.bf16.gmra.mrb[0].mxu0 %v2358
      %v2421 = vpop.f32.mrb[0].mxu0
      %v2422 = vadd.f32 0.0, %v2421
      %v2423 = vpop.f32.mrb[0].mxu0
      %v2424 = vpop.f32.mrb[0].mxu0
      %v2425 = vadd.f32 0.0, %v2424
      %v2426 = vpop.f32.mrb[0].mxu0
      %2427 = vdwg.mxu0
      %v2428 = vadd.f32 %v2317, %v2398
      %v2429 = vadd.f32 %v2320, %v2401
      %v2430 = vadd.f32 %v2325, %v2406
      %v2431 = vadd.f32 %v2328, %v2409
      %v2432 = vadd.f32 %v2333, %v2414
      %v2433 = vadd.f32 %v2336, %v2417
      %v2434 = vadd.f32 %v2341, %v2422
      %v2435 = vadd.f32 %v2344, %v2425
      %v2436 = vld [vmem:[%s6] sm:$0x3]
      %v2438 = vsel %vm2174, %v2166, 0
      %v2441 = vsel %vm2174, %v2167, 0
      %v2444 = vsel %vm2174, %v2168, 0
      %v2447 = vsel %vm2174, %v2169, 0
      %v2450 = vsel %vm2187, %v2436, 0
      %2452 = vmatprep.subr.bf16.mxu0 0
      %2453 = vmatpush1.bf16.msra.mxu0 %v2450
      %2454 = vmatprep.subr.bf16.mxu0 0
      %2455 = vmatpush1.bf16.msra.mxu0 0
      %2456 = vmatprep.subr.bf16.mxu0 0
      %2457 = vmatpush1.bf16.msra.mxu0 0
      %2458 = vmatprep.subr.bf16.mxu0 0
      %2459 = vmatpush1.bf16.msra.mxu0 0
      %2460 = vmatprep.subr.bf16.mxu0 0
      %2461 = vmatpush1.bf16.msra.mxu0 0
      %2462 = vmatprep.subr.bf16.mxu0 0
      %2463 = vmatpush1.bf16.msra.mxu0 0
      %2464 = vmatprep.subr.bf16.mxu0 0
      %2465 = vmatpush1.bf16.msra.mxu0 0
      %2466 = vmatprep.subr.bf16.mxu0 0
      %2467 = vmatpush1.bf16.msra.mxu0 0
      %2468 = vmatprep.subr.bf16.mxu0 0
      %2469 = vmatpush1.bf16.msra.mxu0 0
      %2470 = vmatprep.subr.bf16.mxu0 0
      %2471 = vmatpush1.bf16.msra.mxu0 0
      %2472 = vmatprep.subr.bf16.mxu0 0
      %2473 = vmatpush1.bf16.msra.mxu0 0
      %2474 = vmatprep.subr.bf16.mxu0 0
      %2475 = vmatpush1.bf16.msra.mxu0 0
      %2476 = vmatprep.subr.bf16.mxu0 0
      %2477 = vmatpush1.bf16.msra.mxu0 0
      %2478 = vmatprep.subr.bf16.mxu0 0
      %2479 = vmatpush1.bf16.msra.mxu0 0
      %2480 = vmatprep.subr.bf16.mxu0 0
      %2481 = vmatpush1.bf16.msra.mxu0 0
      %2482 = vmatprep.subr.bf16.mxu0 0
      %2483 = vmatpush1.bf16.msra.mxu0 0
      %2484 = vmatprep.mubr.bf16.mxu0 0
      %2485 = vmatmul.mubr.bf16.gmra.mrb[0].mxu0 %v2438
      %v2486 = vpop.f32.mrb[0].mxu0
      %v2487 = vadd.f32 0.0, %v2486
      %v2488 = vpop.f32.mrb[0].mxu0
      %v2489 = vpop.f32.mrb[0].mxu0
      %v2490 = vadd.f32 0.0, %v2489
      %v2491 = vpop.f32.mrb[0].mxu0
      %2492 = vmatprep.mubr.bf16.mxu0 0
      %2493 = vmatmul.mubr.bf16.gmra.mrb[0].mxu0 %v2441
      %v2494 = vpop.f32.mrb[0].mxu0
      %v2495 = vadd.f32 0.0, %v2494
      %v2496 = vpop.f32.mrb[0].mxu0
      %v2497 = vpop.f32.mrb[0].mxu0
      %v2498 = vadd.f32 0.0, %v2497
      %v2499 = vpop.f32.mrb[0].mxu0
      %2500 = vmatprep.mubr.bf16.mxu0 0
      %2501 = vmatmul.mubr.bf16.gmra.mrb[0].mxu0 %v2444
      %v2502 = vpop.f32.mrb[0].mxu0
      %v2503 = vadd.f32 0.0, %v2502
      %v2504 = vpop.f32.mrb[0].mxu0
      %v2505 = vpop.f32.mrb[0].mxu0
      %v2506 = vadd.f32 0.0, %v2505
      %v2507 = vpop.f32.mrb[0].mxu0
      %2508 = vmatprep.mubr.bf16.mxu0 0
      %2509 = vmatmul.mubr.bf16.gmra.mrb[0].mxu0 %v2447
      %v2510 = vpop.f32.mrb[0].mxu0
      %v2511 = vadd.f32 0.0, %v2510
      %v2512 = vpop.f32.mrb[0].mxu0
      %v2513 = vpop.f32.mrb[0].mxu0
      %v2514 = vadd.f32 0.0, %v2513
      %v2515 = vpop.f32.mrb[0].mxu0
      %2516 = vdwg.mxu0
      %v2517 = vadd.f32 %v2428, %v2487
      %v2518 = vadd.f32 %v2429, %v2490
      %v2519 = vadd.f32 %v2430, %v2495
      %v2520 = vadd.f32 %v2431, %v2498
      %v2521 = vadd.f32 %v2432, %v2503
      %v2522 = vadd.f32 %v2433, %v2506
      %v2523 = vadd.f32 %v2434, %v2511
      %v2524 = vadd.f32 %v2435, %v2514
      %v2525 = vld [vmem:[%s7] sm:$0x1]
      %v2527 = vlaneseq
      %v2528 = vshrl.u32 %v2527, 7
      %v2529 = vsub.s32 0, %v2528
      %v2530 = vrot.slane %v2525, %v2529
      %v2532 = vadd.f32 %v2517, %v2530
      %v2533 = vadd.f32 %v2518, %v2530
      %v2534 = vadd.f32 %v2519, %v2530
      %v2535 = vadd.f32 %v2520, %v2530
      %v2536 = vadd.f32 %v2521, %v2530
      %v2537 = vadd.f32 %v2522, %v2530
      %v2538 = vadd.f32 %v2523, %v2530
      %v2539 = vadd.f32 %v2524, %v2530
      %v2540 = vmax.f32 %v2532, 0.0
      %v2541 = vmax.f32 %v2533, 0.0
      %v2542 = vmax.f32 %v2534, 0.0
      %v2543 = vmax.f32 %v2535, 0.0
      %v2544 = vmax.f32 %v2536, 0.0
      %v2545 = vmax.f32 %v2537, 0.0
      %v2546 = vmax.f32 %v2538, 0.0
      %v2547 = vmax.f32 %v2539, 0.0
      %v2548 = vpack.c.bf16 %v2541, %v2540
      %v2549 = vpack.c.bf16 %v2543, %v2542
      %v2550 = vpack.c.bf16 %v2545, %v2544
      %v2551 = vpack.c.bf16 %v2547, %v2546
      %v2552 = vld [vmem:[%s8] sm:$0xf]
      %v2553 = vld [vmem:[%s8 + $0x4] sm:$0xf]
      %v2554 = vld [vmem:[%s8 + $0x8] sm:$0xf]
      %v2555 = vld [vmem:[%s8 + $0xc] sm:$0xf]
      %v2556 = vld [vmem:[%s9] sm:$0x1]
      %v2558 = vlaneseq
      %v2559 = vshrl.u32 %v2558, 7
      %v2560 = vsub.s32 0, %v2559
      %v2561 = vrot.slane %v2556, %v2560
      %v2567 = vunpack.c.l.b16 %v2552
      %v2568 = vunpack.c.l.b16 %v2553
      %v2569 = vunpack.c.l.b16 %v2554
      %v2570 = vunpack.c.l.b16 %v2555
      %v2571 = vpack.c.b16 %v2568, %v2567
      %v2572 = vpack.c.b16 %v2570, %v2569
      %vm2575 = vcmask 261120
      %v2577 = vsel %vm2575, %v2548, 0
      %v2580 = vsel %vm2575, %v2549, 0
      %v2583 = vsel %vm2575, %v2550, 0
      %v2586 = vsel %vm2575, %v2551, 0
      %2588 = vmatprep.subr.bf16.mxu0 0
      %2589 = vmatpush1.bf16.msra.mxu0 %v2571
      %2590 = vmatprep.subr.bf16.mxu0 0
      %2591 = vmatpush1.bf16.msra.mxu0 %v2572
      %2592 = vmatprep.subr.bf16.mxu0 0
      %2593 = vmatpush1.bf16.msra.mxu0 0
      %2594 = vmatprep.subr.bf16.mxu0 0
      %2595 = vmatpush1.bf16.msra.mxu0 0
      %2596 = vmatprep.subr.bf16.mxu0 0
      %2597 = vmatpush1.bf16.msra.mxu0 0
      %2598 = vmatprep.subr.bf16.mxu0 0
      %2599 = vmatpush1.bf16.msra.mxu0 0
      %2600 = vmatprep.subr.bf16.mxu0 0
      %2601 = vmatpush1.bf16.msra.mxu0 0
      %2602 = vmatprep.subr.bf16.mxu0 0
      %2603 = vmatpush1.bf16.msra.mxu0 0
      %2604 = vmatprep.subr.bf16.mxu0 0
      %2605 = vmatpush1.bf16.msra.mxu0 0
      %2606 = vmatprep.subr.bf16.mxu0 0
      %2607 = vmatpush1.bf16.msra.mxu0 0
      %2608 = vmatprep.subr.bf16.mxu0 0
      %2609 = vmatpush1.bf16.msra.mxu0 0
      %2610 = vmatprep.subr.bf16.mxu0 0
      %2611 = vmatpush1.bf16.msra.mxu0 0
      %2612 = vmatprep.subr.bf16.mxu0 0
      %2613 = vmatpush1.bf16.msra.mxu0 0
      %2614 = vmatprep.subr.bf16.mxu0 0
      %2615 = vmatpush1.bf16.msra.mxu0 0
      %2616 = vmatprep.subr.bf16.mxu0 0
      %2617 = vmatpush1.bf16.msra.mxu0 0
      %2618 = vmatprep.subr.bf16.mxu0 0
      %2619 = vmatpush1.bf16.msra.mxu0 0
      %2620 = vmatprep.mubr.bf16.mxu0 0
      %2621 = vmatmul.mubr.bf16.gmra.mrb[0].mxu0 %v2577
      %v2622 = vpop.f32.mrb[0].mxu0
      %v2623 = vadd.f32 %v2561, %v2622
      %v2624 = vpop.f32.mrb[0].mxu0
      %v2625 = vpop.f32.mrb[0].mxu0
      %v2626 = vadd.f32 %v2561, %v2625
      %v2627 = vpop.f32.mrb[0].mxu0
      %2628 = vmatprep.mubr.bf16.mxu0 0
      %2629 = vmatmul.mubr.bf16.gmra.mrb[0].mxu0 %v2580
      %v2630 = vpop.f32.mrb[0].mxu0
      %v2631 = vadd.f32 %v2561, %v2630
      %v2632 = vpop.f32.mrb[0].mxu0
      %v2633 = vpop.f32.mrb[0].mxu0
      %v2634 = vadd.f32 %v2561, %v2633
      %v2635 = vpop.f32.mrb[0].mxu0
      %2636 = vmatprep.mubr.bf16.mxu0 0
      %2637 = vmatmul.mubr.bf16.gmra.mrb[0].mxu0 %v2583
      %v2638 = vpop.f32.mrb[0].mxu0
      %v2639 = vadd.f32 %v2561, %v2638
      %v2640 = vpop.f32.mrb[0].mxu0
      %v2641 = vpop.f32.mrb[0].mxu0
      %v2642 = vadd.f32 %v2561, %v2641
      %v2643 = vpop.f32.mrb[0].mxu0
      %2644 = vmatprep.mubr.bf16.mxu0 0
      %2645 = vmatmul.mubr.bf16.gmra.mrb[0].mxu0 %v2586
      %v2646 = vpop.f32.mrb[0].mxu0
      %v2647 = vadd.f32 %v2561, %v2646
      %v2648 = vpop.f32.mrb[0].mxu0
      %v2649 = vpop.f32.mrb[0].mxu0
      %v2650 = vadd.f32 %v2561, %v2649
      %v2651 = vpop.f32.mrb[0].mxu0
      %2652 = vdwg.mxu0
      %2653 = vst.msk [vmem:[%s405] sm:$0xff] %vm2575, %v2623
      %2654 = vst.msk [vmem:[%s405 + $0x8] sm:$0xff] %vm2575, %v2626
      %2655 = vst.msk [vmem:[%s405 + $0x10] sm:$0xff] %vm2575, %v2631
      %2656 = vst.msk [vmem:[%s405 + $0x18] sm:$0xff] %vm2575, %v2634
      %2657 = vst.msk [vmem:[%s405 + $0x20] sm:$0xff] %vm2575, %v2639
      %2658 = vst.msk [vmem:[%s405 + $0x28] sm:$0xff] %vm2575, %v2642
      %2659 = vst.msk [vmem:[%s405 + $0x30] sm:$0xff] %vm2575, %v2647
      %2660 = vst.msk [vmem:[%s405 + $0x38] sm:$0xff] %vm2575, %v2650
      %s2661 = smul.u32 8, %s21
      %p2662 = scmp.lt.s32.totalorder %s2661, 31
      %s2663 = scalar_select %p2662, %s2661, 31
      %s2664 = smul.addr %s2663, 8
      %s2665 = scalar_lea.vmem %s10, %s2664
      // Predicated region
      $region61: #{tpu_custom_call.1} parent=59 // pred_check
        %p2666 = pneg %p264
      $region62: #{tpu_custom_call.1} parent=59 // pred_check_branch
        %2668 = sbr.rel (%p2666) target = $region64
      $region63: #{tpu_custom_call.1} parent=59 // pred_region
        %s2669 = smul.u32 8, %s21
      $region64: #{tpu_custom_call.1} parent=59 // pred_fallthru
        _
    $region60: #{tpu_custom_call.1} parent=5 // pred_fallthru
      _
    %p2670 = scmp.le.s32.totalorder 2, %s16
    // Predicated region
    $region65: #{tpu_custom_call.1} parent=5 // pred_check
      %p2671 = pneg %p2670
    $region66: #{tpu_custom_call.1} parent=5 // pred_check_branch
      %2673 = sbr.rel (%p2671) target = $region68
    $region67: #{tpu_custom_call.1} parent=5 // pred_region
      %s2674 = ssub.s32 %s16, 2
      // Predicated region
      $region69: #{tpu_custom_call.1} parent=67 // pred_check
        %p2675 = pneg %p270
      $region70: #{tpu_custom_call.1} parent=67 // pred_check_branch
        %2677 = sbr.rel (%p2675) target = $region72
      $region71: #{tpu_custom_call.1} parent=67 // pred_region
        %s2678 = smul.u32 8, %s22
        %p2679 = scmp.lt.s32.totalorder %s2678, 31
        %s2680 = scalar_select %p2679, %s2678, 31
        %s2681 = smul.addr %s2680, 8
        %s2682 = scalar_lea.vmem %s10, %s2681
      $region72: #{tpu_custom_call.1} parent=67 // pred_fallthru
        _
    $region68: #{tpu_custom_call.1} parent=5 // pred_fallthru
      _
  $region6: #{tpu_custom_call.1} parent=0 // loop_footer
    %s20 = sadd.s32 1, %s16
  $region7: #{tpu_custom_call.1} parent=0 // loop_footer_branch
    %15 = sbr.rel target = $region3
  $region8: #{tpu_custom_call.1} parent=0 // loop_exit
    _

</llo_original>
